<compile_context>
chip_gen: v7x
topology: tpu7x:2x2x1
jax: 0.10.0
libtpu: 0.0.40
codegen_flags: <defaults>
</compile_context>

<pallas_src>
import functools

import jax
import jax.numpy as jnp
import numpy as np
from jax import lax
from jax.experimental import pallas as pl
from jax.experimental.pallas import tpu as pltpu

EPS = 1e-8
TOP_K = 5
LANE = 128


# ----------------------------------------------------------------------------
# Fused kernel: one grid step processes BT requests (queries + their N pages).
# ----------------------------------------------------------------------------
def _rag_kernel(q_ref, p_ref, wq_ref, bq_ref, wp_ref, bp_ref, wg_ref, bg_ref,
                poolq_ref, poolp_ref, own_ref, ext_ref,
                resp_ref, scores_ref, *, n_pages):
    f32 = jnp.float32

    # --- query encoder: tanh(x @ Wq + bq), token mean-pool via constant matmul
    qh = jnp.tanh(jnp.dot(q_ref[...], wq_ref[...], preferred_element_type=f32)
                  + bq_ref[...])                                    # (BT*S, Hp)
    qvec = jnp.dot(poolq_ref[...], qh, preferred_element_type=f32)  # (BT,  Hp)

    # --- web-page encoder: all BT*N*S token rows in one flat MXU matmul ------
    ph = jnp.tanh(jnp.dot(p_ref[...], wp_ref[...], preferred_element_type=f32)
                  + bp_ref[...])                                    # (BT*N*S, Hp)
    pvec = jnp.dot(poolp_ref[...], ph, preferred_element_type=f32)  # (BT*N, Hp)

    # --- cosine similarity (norms clamped at EPS, no transpose of pvec) ------
    q_n = qvec / jnp.maximum(
        jnp.sqrt(jnp.sum(qvec * qvec, axis=-1, keepdims=True)), EPS)
    p_n = pvec / jnp.maximum(
        jnp.sqrt(jnp.sum(pvec * pvec, axis=-1, keepdims=True)), EPS)
    s_full = lax.dot_general(q_n, p_n, (((1,), (1,)), ((), ())),
                             preferred_element_type=f32)            # (BT, BT*N)

    own = own_ref[...]                    # 1.0 where page j belongs to query b
    s_own = s_full * own
    # lane-dense (BT, 128) scores block: column n = score of query b's page n
    scores_ref[...] = jnp.dot(s_own, ext_ref[...], preferred_element_type=f32)

    # --- page selection: retrieval_scores.argsort()[:5] ----------------------
    # Ascending argsort keeps the 5 LOWEST-scoring pages; with N == 6 that is
    # "drop the single argmax-score page" (ties resolved by lowest lane index).
    if n_pages > TOP_K:
        s_masked = jnp.where(own > 0, s_full, -jnp.inf)
        mx = jnp.max(s_masked, axis=-1, keepdims=True)               # (BT, 1)
        lane = lax.broadcasted_iota(jnp.int32, s_full.shape, 1)
        best = jnp.min(jnp.where(s_masked >= mx, lane, s_full.shape[1]),
                       axis=-1, keepdims=True)                       # (BT, 1)
        keep = (own > 0) & (lane != best)
        w = jnp.where(keep, 1.0 / (n_pages - 1), 0.0).astype(f32)    # (BT, BT*N)
    else:
        # N <= 5: argsort()[:5] selects every page -> plain mean of own pages.
        w = (own / n_pages).astype(f32)

    # --- response generator on every page vector, selected-mean via matmul ---
    g = jnp.tanh(jnp.dot(pvec, wg_ref[...], preferred_element_type=f32)
                 + bg_ref[...])                                      # (BT*N, Hp)
    resp_ref[...] = jnp.dot(w, g, preferred_element_type=f32)        # (BT, Hp)


# ----------------------------------------------------------------------------
# Wrapper-side layout plumbing + constant pooling / selection matrices.
# ----------------------------------------------------------------------------
def _round_up(n, m):
    return -(-n // m) * m


def _pad2(x, rows, cols):
    return jnp.pad(x, ((0, rows - x.shape[0]), (0, cols - x.shape[1])))


def _selection_constants(bt, s, n, lane):
    # Token mean-pool for BT stacked queries: (BT, BT*S).
    r = np.arange(bt)[:, None]
    c = np.arange(bt * s)[None, :]
    pool_q = np.where(c // s == r, 1.0 / s, 0.0).astype(np.float32)
    # Token mean-pool for BT*N stacked pages: (BT*N, BT*N*S).
    r = np.arange(bt * n)[:, None]
    c = np.arange(bt * n * s)[None, :]
    pool_p = np.where(c // s == r, 1.0 / s, 0.0).astype(np.float32)
    # Own-page mask: own[b, j] == 1 iff page j belongs to query b.
    r = np.arange(bt)[:, None]
    c = np.arange(bt * n)[None, :]
    own = np.where(c // n == r, 1.0, 0.0).astype(np.float32)
    # Score extractor: own-masked (BT, BT*N) scores -> lane-dense (BT, 128).
    ext = np.zeros((bt * n, lane), np.float32)
    ext[np.arange(bt * n), np.arange(bt * n) % n] = 1.0
    return (jnp.asarray(pool_q), jnp.asarray(pool_p),
            jnp.asarray(own), jnp.asarray(ext))


def rag_forward(query_tokens, page_tokens, params, *, block_b=8):
    """Batched RAG forward: B requests, each with its own N candidate pages."""
    B, S, E = query_tokens.shape
    Bp, N, Sp, Ep_ = page_tokens.shape
    assert (Bp, Sp, Ep_) == (B, S, E)
    H = params['wq'].shape[1]
    # TODO(synk): general top-5-of-N for N > 6 needs a real sort / top_k; the
    # fused kernel covers the module's N <= 6 case (argsort()[:5] == drop the
    # single argmax-score page).
    assert N <= TOP_K + 1, "fused kernel supports at most 6 web pages"
    assert B % block_b == 0, "batch must be a multiple of block_b"
    BT = block_b

    E_pad = _round_up(E, LANE)
    H_pad = _round_up(H, LANE)
    f32 = jnp.float32

    # Flatten token axes and zero-pad feature dims to full 128-lane width.
    # This is free layout plumbing absorbed by the input DMAs.
    q_flat = jnp.pad(query_tokens.astype(f32),
                     ((0, 0), (0, 0), (0, E_pad - E))).reshape(B * S, E_pad)
    p_flat = jnp.pad(page_tokens.astype(f32),
                     ((0, 0), (0, 0), (0, 0), (0, E_pad - E))
                     ).reshape(B * N * S, E_pad)
    wq = _pad2(params['wq'].astype(f32), E_pad, H_pad)
    wp = _pad2(params['wp'].astype(f32), E_pad, H_pad)
    wg = _pad2(params['wg'].astype(f32), H_pad, H_pad)
    bq = _pad2(params['bq'].reshape(1, H).astype(f32), 1, H_pad)
    bp = _pad2(params['bp'].reshape(1, H).astype(f32), 1, H_pad)
    bg = _pad2(params['bg'].reshape(1, H).astype(f32), 1, H_pad)

    pool_q, pool_p, own, ext = _selection_constants(BT, S, N, LANE)

    grid = (B // BT,)
    batch_map = lambda b: (b, 0)
    const_map = lambda b: (0, 0)
    in_specs = [
        pl.BlockSpec((BT * S, E_pad), batch_map),          # query tokens
        pl.BlockSpec((BT * N * S, E_pad), batch_map),      # page tokens
        pl.BlockSpec((E_pad, H_pad), const_map),           # Wq
        pl.BlockSpec((1, H_pad), const_map),               # bq
        pl.BlockSpec((E_pad, H_pad), const_map),           # Wp
        pl.BlockSpec((1, H_pad), const_map),               # bp
        pl.BlockSpec((H_pad, H_pad), const_map),           # Wg
        pl.BlockSpec((1, H_pad), const_map),               # bg
        pl.BlockSpec((BT, BT * S), const_map),             # query token pool
        pl.BlockSpec((BT * N, BT * N * S), const_map),     # page token pool
        pl.BlockSpec((BT, BT * N), const_map),             # own-page mask
        pl.BlockSpec((BT * N, LANE), const_map),           # score extractor
    ]
    out_specs = (pl.BlockSpec((BT, H_pad), batch_map),
                 pl.BlockSpec((BT, LANE), batch_map))

    resp_p, scores_p = pl.pallas_call(
        functools.partial(_rag_kernel, n_pages=N),
        out_shape=(jax.ShapeDtypeStruct((B, H_pad), f32),
                   jax.ShapeDtypeStruct((B, LANE), f32)),
        grid=grid,
        in_specs=in_specs,
        out_specs=out_specs,
        compiler_params=pltpu.CompilerParams(
            dimension_semantics=("parallel",)),   # both TensorCores on v7x
    )(q_flat, p_flat, wq, bq, wp, bp, wg, bg, pool_q, pool_p, own, ext)

    return resp_p[:, :H], scores_p[:, :N]


# ----------------------------------------------------------------------------
# Deterministic inputs + smoke test.
# ----------------------------------------------------------------------------
if __name__ == "__main__":
    S, E, H = 8, 32, 32        # tokens per doc, embed dim, hidden dim
    N = 6                      # candidate web pages per request
    B = 16                     # batch of RAG requests per pallas_call

    key = jax.random.PRNGKey(0)
    k_q, k_p, k_wq, k_wp, k_wg = jax.random.split(key, 5)

    query_tokens = jax.random.normal(k_q, (B, S, E), dtype=jnp.float32)
    page_tokens = jax.random.normal(k_p, (B, N, S, E), dtype=jnp.float32)

    params = {
        'wq': jax.random.normal(k_wq, (E, H), dtype=jnp.float32) * 0.1,
        'bq': jnp.zeros((1, H), dtype=jnp.float32),
        'wp': jax.random.normal(k_wp, (E, H), dtype=jnp.float32) * 0.1,
        'bp': jnp.zeros((1, H), dtype=jnp.float32),
        'wg': jax.random.normal(k_wg, (H, H), dtype=jnp.float32) * 0.1,
        'bg': jnp.zeros((1, H), dtype=jnp.float32),
    }

    response, scores = jax.jit(rag_forward)(query_tokens, page_tokens, params)
    jax.block_until_ready((response, scores))

    assert response.shape == (B, H)
    assert scores.shape == (B, N)
    assert bool(jnp.all(jnp.isfinite(response)))
    assert bool(jnp.all(jnp.isfinite(scores)))
    print("KERNEL_OK")
</pallas_src>

<mosaic_0001>
module attributes {stable_mosaic.version = 11 : i64} {
  func.func @_rag_kernel(%arg0: i32, %arg1: memref<64x128xf32, #tpu.memory_space<vmem>>, %arg2: memref<384x128xf32, #tpu.memory_space<vmem>>, %arg3: memref<128x128xf32, #tpu.memory_space<vmem>>, %arg4: memref<1x128xf32, #tpu.memory_space<vmem>>, %arg5: memref<128x128xf32, #tpu.memory_space<vmem>>, %arg6: memref<1x128xf32, #tpu.memory_space<vmem>>, %arg7: memref<128x128xf32, #tpu.memory_space<vmem>>, %arg8: memref<1x128xf32, #tpu.memory_space<vmem>>, %arg9: memref<8x64xf32, #tpu.memory_space<vmem>>, %arg10: memref<48x384xf32, #tpu.memory_space<vmem>>, %arg11: memref<8x48xf32, #tpu.memory_space<vmem>>, %arg12: memref<48x128xf32, #tpu.memory_space<vmem>>, %arg13: memref<8x128xf32, #tpu.memory_space<vmem>>, %arg14: memref<8x128xf32, #tpu.memory_space<vmem>>) attributes {dimension_semantics = [#tpu.dimension_semantics<parallel>], iteration_bounds = array<i64: 2>, scalar_prefetch = 0 : i64, scratch_operands = 0 : i64, tpu.core_type = #tpu.core_type<tc>, window_params = [{transform_indices = @transform_0, window_bounds = array<i64: 64, 128>}, {transform_indices = @transform_1, window_bounds = array<i64: 384, 128>}, {pipeline_mode = #tpu.pipeline_mode<synchronous>, transform_indices = @transform_2, window_bounds = array<i64: 128, 128>}, {pipeline_mode = #tpu.pipeline_mode<synchronous>, transform_indices = @transform_3, window_bounds = array<i64: 1, 128>}, {pipeline_mode = #tpu.pipeline_mode<synchronous>, transform_indices = @transform_4, window_bounds = array<i64: 128, 128>}, {pipeline_mode = #tpu.pipeline_mode<synchronous>, transform_indices = @transform_5, window_bounds = array<i64: 1, 128>}, {pipeline_mode = #tpu.pipeline_mode<synchronous>, transform_indices = @transform_6, window_bounds = array<i64: 128, 128>}, {pipeline_mode = #tpu.pipeline_mode<synchronous>, transform_indices = @transform_7, window_bounds = array<i64: 1, 128>}, {pipeline_mode = #tpu.pipeline_mode<synchronous>, transform_indices = @transform_8, window_bounds = array<i64: 8, 64>}, {pipeline_mode = #tpu.pipeline_mode<synchronous>, transform_indices = @transform_9, window_bounds = array<i64: 48, 384>}, {pipeline_mode = #tpu.pipeline_mode<synchronous>, transform_indices = @transform_10, window_bounds = array<i64: 8, 48>}, {pipeline_mode = #tpu.pipeline_mode<synchronous>, transform_indices = @transform_11, window_bounds = array<i64: 48, 128>}, {transform_indices = @transform_12, window_bounds = array<i64: 8, 128>}, {transform_indices = @transform_13, window_bounds = array<i64: 8, 128>}]} {
    %c0 = arith.constant 0 : index
    %c0_0 = arith.constant 0 : index
    %0 = vector.load %arg1[%c0, %c0_0] : memref<64x128xf32, #tpu.memory_space<vmem>>, vector<64x128xf32>
    %c0_1 = arith.constant 0 : index
    %c0_2 = arith.constant 0 : index
    %1 = vector.load %arg3[%c0_1, %c0_2] : memref<128x128xf32, #tpu.memory_space<vmem>>, vector<128x128xf32>
    %cst = arith.constant dense<0.000000e+00> : vector<64x128xf32>
    %2 = tpu.matmul %0, %1, %cst {dimension_numbers = #tpu.dot_dimension_numbers<[1], [0], [0], [1], [0, 0, 1, 1], [], []>} : vector<64x128xf32>, vector<128x128xf32>, vector<64x128xf32> -> vector<64x128xf32>
    %c0_3 = arith.constant 0 : index
    %c0_4 = arith.constant 0 : index
    %3 = vector.load %arg4[%c0_3, %c0_4] : memref<1x128xf32, #tpu.memory_space<vmem>>, vector<1x128xf32>
    %4 = vector.broadcast %3 : vector<1x128xf32> to vector<64x128xf32>
    %5 = arith.addf %2, %4 : vector<64x128xf32>
    %6 = math.tanh %5 : vector<64x128xf32>
    %c0_5 = arith.constant 0 : index
    %c0_6 = arith.constant 0 : index
    %7 = vector.load %arg9[%c0_5, %c0_6] : memref<8x64xf32, #tpu.memory_space<vmem>>, vector<8x64xf32>
    %cst_7 = arith.constant dense<0.000000e+00> : vector<8x128xf32>
    %8 = tpu.matmul %7, %6, %cst_7 {dimension_numbers = #tpu.dot_dimension_numbers<[1], [0], [0], [1], [0, 0, 1, 1], [], []>} : vector<8x64xf32>, vector<64x128xf32>, vector<8x128xf32> -> vector<8x128xf32>
    %c0_8 = arith.constant 0 : index
    %c0_9 = arith.constant 0 : index
    %9 = vector.load %arg2[%c0_8, %c0_9] : memref<384x128xf32, #tpu.memory_space<vmem>>, vector<384x128xf32>
    %c0_10 = arith.constant 0 : index
    %c0_11 = arith.constant 0 : index
    %10 = vector.load %arg5[%c0_10, %c0_11] : memref<128x128xf32, #tpu.memory_space<vmem>>, vector<128x128xf32>
    %cst_12 = arith.constant dense<0.000000e+00> : vector<384x128xf32>
    %11 = tpu.matmul %9, %10, %cst_12 {dimension_numbers = #tpu.dot_dimension_numbers<[1], [0], [0], [1], [0, 0, 1, 1], [], []>} : vector<384x128xf32>, vector<128x128xf32>, vector<384x128xf32> -> vector<384x128xf32>
    %c0_13 = arith.constant 0 : index
    %c0_14 = arith.constant 0 : index
    %12 = vector.load %arg6[%c0_13, %c0_14] : memref<1x128xf32, #tpu.memory_space<vmem>>, vector<1x128xf32>
    %13 = vector.broadcast %12 : vector<1x128xf32> to vector<384x128xf32>
    %14 = arith.addf %11, %13 : vector<384x128xf32>
    %15 = math.tanh %14 : vector<384x128xf32>
    %c0_15 = arith.constant 0 : index
    %c0_16 = arith.constant 0 : index
    %16 = vector.load %arg10[%c0_15, %c0_16] : memref<48x384xf32, #tpu.memory_space<vmem>>, vector<48x384xf32>
    %cst_17 = arith.constant dense<0.000000e+00> : vector<48x128xf32>
    %17 = tpu.matmul %16, %15, %cst_17 {dimension_numbers = #tpu.dot_dimension_numbers<[1], [0], [0], [1], [0, 0, 1, 1], [], []>} : vector<48x384xf32>, vector<384x128xf32>, vector<48x128xf32> -> vector<48x128xf32>
    %18 = arith.mulf %8, %8 : vector<8x128xf32>
    %cst_18 = arith.constant dense<0.000000e+00> : vector<8xf32>
    %19 = vector.multi_reduction <add>, %18, %cst_18 [1] : vector<8x128xf32> to vector<8xf32>
    %20 = vector.shape_cast %19 : vector<8xf32> to vector<8x1xf32>
    %21 = math.sqrt %20 : vector<8x1xf32>
    %cst_19 = arith.constant 9.99999993E-9 : f32
    %22 = vector.broadcast %cst_19 : f32 to vector<8x1xf32>
    %23 = arith.maximumf %21, %22 : vector<8x1xf32>
    %24 = vector.broadcast %23 : vector<8x1xf32> to vector<8x128xf32>
    %25 = arith.divf %8, %24 : vector<8x128xf32>
    %26 = arith.mulf %17, %17 : vector<48x128xf32>
    %cst_20 = arith.constant dense<0.000000e+00> : vector<48xf32>
    %27 = vector.multi_reduction <add>, %26, %cst_20 [1] : vector<48x128xf32> to vector<48xf32>
    %28 = vector.shape_cast %27 : vector<48xf32> to vector<48x1xf32>
    %29 = math.sqrt %28 : vector<48x1xf32>
    %cst_21 = arith.constant 9.99999993E-9 : f32
    %30 = vector.broadcast %cst_21 : f32 to vector<48x1xf32>
    %31 = arith.maximumf %29, %30 : vector<48x1xf32>
    %32 = vector.broadcast %31 : vector<48x1xf32> to vector<48x128xf32>
    %33 = arith.divf %17, %32 : vector<48x128xf32>
    %cst_22 = arith.constant dense<0.000000e+00> : vector<8x48xf32>
    %34 = tpu.matmul %25, %33, %cst_22 {dimension_numbers = #tpu.dot_dimension_numbers<[1], [1], [0], [0], [0, 0, 1, 0], [], []>} : vector<8x128xf32>, vector<48x128xf32>, vector<8x48xf32> -> vector<8x48xf32>
    %c0_23 = arith.constant 0 : index
    %c0_24 = arith.constant 0 : index
    %35 = vector.load %arg11[%c0_23, %c0_24] : memref<8x48xf32, #tpu.memory_space<vmem>>, vector<8x48xf32>
    %36 = arith.mulf %34, %35 : vector<8x48xf32>
    %c0_25 = arith.constant 0 : index
    %c0_26 = arith.constant 0 : index
    %37 = vector.load %arg12[%c0_25, %c0_26] : memref<48x128xf32, #tpu.memory_space<vmem>>, vector<48x128xf32>
    %cst_27 = arith.constant dense<0.000000e+00> : vector<8x128xf32>
    %38 = tpu.matmul %36, %37, %cst_27 {dimension_numbers = #tpu.dot_dimension_numbers<[1], [0], [0], [1], [0, 0, 1, 1], [], []>} : vector<8x48xf32>, vector<48x128xf32>, vector<8x128xf32> -> vector<8x128xf32>
    %c0_28 = arith.constant 0 : index
    %c0_29 = arith.constant 0 : index
    %39 = vector.load %arg14[%c0_28, %c0_29] : memref<8x128xf32, #tpu.memory_space<vmem>>, vector<8x128xf32>
    tpu.vector_store %arg14[%c0_28, %c0_29], %38 {strides = array<i32>} : memref<8x128xf32, #tpu.memory_space<vmem>>, vector<8x128xf32>,
    %cst_30 = arith.constant 0.000000e+00 : f32
    %40 = vector.broadcast %cst_30 : f32 to vector<8x48xf32>
    %41 = arith.cmpf ogt, %35, %40 : vector<8x48xf32>
    %cst_31 = arith.constant 0xFF800000 : f32
    %42 = vector.broadcast %cst_31 : f32 to vector<8x48xf32>
    %43 = arith.select %41, %34, %42 : vector<8x48xi1>, vector<8x48xf32>
    %cst_32 = arith.constant dense<0xFF800000> : vector<8xf32>
    %44 = vector.multi_reduction <maximumf>, %43, %cst_32 [1] : vector<8x48xf32> to vector<8xf32>
    %45 = vector.shape_cast %44 : vector<8xf32> to vector<8x1xf32>
    %46 = tpu.iota {dimensions = array<i32: 1>} : vector<8x48xi32>
    %47 = vector.broadcast %45 : vector<8x1xf32> to vector<8x48xf32>
    %48 = arith.cmpf oge, %43, %47 : vector<8x48xf32>
    %c48_i32 = arith.constant 48 : i32
    %49 = vector.broadcast %c48_i32 : i32 to vector<8x48xi32>
    %50 = arith.select %48, %46, %49 : vector<8x48xi1>, vector<8x48xi32>
    %cst_33 = arith.constant dense<2147483647> : vector<8xi32>
    %51 = vector.multi_reduction <minsi>, %50, %cst_33 [1] : vector<8x48xi32> to vector<8xi32>
    %52 = vector.shape_cast %51 : vector<8xi32> to vector<8x1xi32>
    %cst_34 = arith.constant 0.000000e+00 : f32
    %53 = vector.broadcast %cst_34 : f32 to vector<8x48xf32>
    %54 = arith.cmpf ogt, %35, %53 : vector<8x48xf32>
    %55 = vector.broadcast %52 : vector<8x1xi32> to vector<8x48xi32>
    %56 = arith.cmpi ne, %46, %55 : vector<8x48xi32>
    %57 = arith.andi %54, %56 : vector<8x48xi1>
    %cst_35 = arith.constant 2.000000e-01 : f32
    %cst_36 = arith.constant 0.000000e+00 : f32
    %58 = vector.broadcast %cst_35 : f32 to vector<8x48xf32>
    %59 = vector.broadcast %cst_36 : f32 to vector<8x48xf32>
    %60 = arith.select %57, %58, %59 : vector<8x48xi1>, vector<8x48xf32>
    %c0_37 = arith.constant 0 : index
    %c0_38 = arith.constant 0 : index
    %61 = vector.load %arg7[%c0_37, %c0_38] : memref<128x128xf32, #tpu.memory_space<vmem>>, vector<128x128xf32>
    %cst_39 = arith.constant dense<0.000000e+00> : vector<48x128xf32>
    %62 = tpu.matmul %17, %61, %cst_39 {dimension_numbers = #tpu.dot_dimension_numbers<[1], [0], [0], [1], [0, 0, 1, 1], [], []>} : vector<48x128xf32>, vector<128x128xf32>, vector<48x128xf32> -> vector<48x128xf32>
    %c0_40 = arith.constant 0 : index
    %c0_41 = arith.constant 0 : index
    %63 = vector.load %arg8[%c0_40, %c0_41] : memref<1x128xf32, #tpu.memory_space<vmem>>, vector<1x128xf32>
    %64 = vector.broadcast %63 : vector<1x128xf32> to vector<48x128xf32>
    %65 = arith.addf %62, %64 : vector<48x128xf32>
    %66 = math.tanh %65 : vector<48x128xf32>
    %cst_42 = arith.constant dense<0.000000e+00> : vector<8x128xf32>
    %67 = tpu.matmul %60, %66, %cst_42 {dimension_numbers = #tpu.dot_dimension_numbers<[1], [0], [0], [1], [0, 0, 1, 1], [], []>} : vector<8x48xf32>, vector<48x128xf32>, vector<8x128xf32> -> vector<8x128xf32>
    %c0_43 = arith.constant 0 : index
    %c0_44 = arith.constant 0 : index
    %68 = vector.load %arg13[%c0_43, %c0_44] : memref<8x128xf32, #tpu.memory_space<vmem>>, vector<8x128xf32>
    tpu.vector_store %arg13[%c0_43, %c0_44], %67 {strides = array<i32>} : memref<8x128xf32, #tpu.memory_space<vmem>>, vector<8x128xf32>,
    return
  }
  func.func @transform_0(%arg0: i32) -> (i32, i32) {
    %c0_i32 = arith.constant 0 : i32
    %c0_i32_0 = arith.constant 0 : i32
    return %arg0, %c0_i32 : i32, i32
  }
  func.func @transform_1(%arg0: i32) -> (i32, i32) {
    %c0_i32 = arith.constant 0 : i32
    %c0_i32_0 = arith.constant 0 : i32
    return %arg0, %c0_i32 : i32, i32
  }
  func.func @transform_2(%arg0: i32) -> (i32, i32) {
    %c0_i32 = arith.constant 0 : i32
    %c0_i32_0 = arith.constant 0 : i32
    %c0_i32_1 = arith.constant 0 : i32
    return %c0_i32, %c0_i32_0 : i32, i32
  }
  func.func @transform_3(%arg0: i32) -> (i32, i32) {
    %c0_i32 = arith.constant 0 : i32
    %c0_i32_0 = arith.constant 0 : i32
    %c0_i32_1 = arith.constant 0 : i32
    return %c0_i32, %c0_i32_0 : i32, i32
  }
  func.func @transform_4(%arg0: i32) -> (i32, i32) {
    %c0_i32 = arith.constant 0 : i32
    %c0_i32_0 = arith.constant 0 : i32
    %c0_i32_1 = arith.constant 0 : i32
    return %c0_i32, %c0_i32_0 : i32, i32
  }
  func.func @transform_5(%arg0: i32) -> (i32, i32) {
    %c0_i32 = arith.constant 0 : i32
    %c0_i32_0 = arith.constant 0 : i32
    %c0_i32_1 = arith.constant 0 : i32
    return %c0_i32, %c0_i32_0 : i32, i32
  }
  func.func @transform_6(%arg0: i32) -> (i32, i32) {
    %c0_i32 = arith.constant 0 : i32
    %c0_i32_0 = arith.constant 0 : i32
    %c0_i32_1 = arith.constant 0 : i32
    return %c0_i32, %c0_i32_0 : i32, i32
  }
  func.func @transform_7(%arg0: i32) -> (i32, i32) {
    %c0_i32 = arith.constant 0 : i32
    %c0_i32_0 = arith.constant 0 : i32
    %c0_i32_1 = arith.constant 0 : i32
    return %c0_i32, %c0_i32_0 : i32, i32
  }
  func.func @transform_8(%arg0: i32) -> (i32, i32) {
    %c0_i32 = arith.constant 0 : i32
    %c0_i32_0 = arith.constant 0 : i32
    %c0_i32_1 = arith.constant 0 : i32
    return %c0_i32, %c0_i32_0 : i32, i32
  }
  func.func @transform_9(%arg0: i32) -> (i32, i32) {
    %c0_i32 = arith.constant 0 : i32
    %c0_i32_0 = arith.constant 0 : i32
    %c0_i32_1 = arith.constant 0 : i32
    return %c0_i32, %c0_i32_0 : i32, i32
  }
  func.func @transform_10(%arg0: i32) -> (i32, i32) {
    %c0_i32 = arith.constant 0 : i32
    %c0_i32_0 = arith.constant 0 : i32
    %c0_i32_1 = arith.constant 0 : i32
    return %c0_i32, %c0_i32_0 : i32, i32
  }
  func.func @transform_11(%arg0: i32) -> (i32, i32) {
    %c0_i32 = arith.constant 0 : i32
    %c0_i32_0 = arith.constant 0 : i32
    %c0_i32_1 = arith.constant 0 : i32
    return %c0_i32, %c0_i32_0 : i32, i32
  }
  func.func @transform_12(%arg0: i32) -> (i32, i32) {
    %c0_i32 = arith.constant 0 : i32
    %c0_i32_0 = arith.constant 0 : i32
    return %arg0, %c0_i32 : i32, i32
  }
  func.func @transform_13(%arg0: i32) -> (i32, i32) {
    %c0_i32 = arith.constant 0 : i32
    %c0_i32_0 = arith.constant 0 : i32
    return %arg0, %c0_i32 : i32, i32
  }
}

</mosaic_0001>

<llo_original>
// kernel: rag_forward.1
$region0: #{rag_forward.1}
  #allocation0 [shape = 'u32[]', space=smem, size = 0x4, offset = 0x4, fixed_abs, tag = 'smem constant byte address 0x4 - core index']
  #allocation1 [shape = 'u32[144,128]{1,0:T(1,128)}', space=vmem, size = 0x12000, scoped, tag = 'internal scratch']
  %s0 = inlined_call_operand.vmem [shape: f32[128,128], index: 0, kind: input, shape index: {}]
  %s1 = inlined_call_operand.vmem [shape: f32[768,128], index: 1, kind: input, shape index: {}]
  %s2 = inlined_call_operand.vmem [shape: f32[128,128], index: 2, kind: input, shape index: {}]
  %s3 = inlined_call_operand.vmem [shape: f32[1,128], index: 3, kind: input, shape index: {}]
  %s4 = inlined_call_operand.vmem [shape: f32[128,128], index: 4, kind: input, shape index: {}]
  %s5 = inlined_call_operand.vmem [shape: f32[1,128], index: 5, kind: input, shape index: {}]
  %s6 = inlined_call_operand.vmem [shape: f32[128,128], index: 6, kind: input, shape index: {}]
  %s7 = inlined_call_operand.vmem [shape: f32[1,128], index: 7, kind: input, shape index: {}]
  %s8 = inlined_call_operand.vmem [shape: f32[8,64], index: 8, kind: input, shape index: {}]
  %s9 = inlined_call_operand.vmem [shape: f32[48,384], index: 9, kind: input, shape index: {}]
  %s10 = inlined_call_operand.vmem [shape: f32[8,48], index: 10, kind: input, shape index: {}]
  %s11 = inlined_call_operand.vmem [shape: f32[48,128], index: 11, kind: input, shape index: {}]
  %s12 = inlined_call_operand.hbm [shape: f32[16,128], index: 12, kind: output, shape index: {0}]
  %s13 = inlined_call_operand.vmem [shape: f32[16,128], index: 13, kind: output, shape index: {1}]
  %14 = xla_tuple %s12, %s13
  %s15 = sld [smem:[#allocation0]]
  $region89: #{rag_forward.1} parent=0
    _
  %s17 = ssub.s32 1, %s15
  %s18 = scalar_select 0, %s17, %s15
  $region1: #{rag_forward.1} parent=0
    #allocation2 [shape = 'u8[8192]{0}', space=vmem, size = 0x2000, scoped, tag = 'output window, operand 0']
    #allocation3 [shape = 's32[2]{0}', space=sflag, size = 0x8, scoped, tag = 'scoped memory for rag_forward.1']
    %19 = vsyncpa [#allocation3], 0
    %s20 = scalar_lea.sflag [#allocation3], 1
    %21 = vsyncpa %s20, 0
    loop: start=0, step=1, limit=4
    $region2: #{rag_forward.1} parent=1 // loop_pre_header
      _
    $region3: #{rag_forward.1} parent=1 // loop_header
      %s23 = sphi 0, %s27
      %p24 = scmp.ge.s32.totalorder %s23, 4
      %s33 = sphi 0, %s35
      %s36 = sphi 0, %s33
      %s37 = sphi 0, %s36
      %s53 = sphi 0, %s37
      %s59 = sphi 0, %s61
      %s62 = sphi 0, %s59
      %s63 = sphi 0, %s62
      %s79 = sphi 0, %s63
      %s83 = sphi 0, %s83
      %s85 = sphi 0, %s83
      %s86 = sphi 0, %s85
      %s100 = sphi 0, %s86
      %s104 = sphi 0, %s104
      %s106 = sphi 0, %s104
      %s107 = sphi 0, %s106
      %s121 = sphi 0, %s107
      %s125 = sphi 0, %s125
      %s127 = sphi 0, %s125
      %s128 = sphi 0, %s127
      %s142 = sphi 0, %s128
      %s146 = sphi 0, %s146
      %s148 = sphi 0, %s146
      %s149 = sphi 0, %s148
      %s163 = sphi 0, %s149
      %s167 = sphi 0, %s167
      %s169 = sphi 0, %s167
      %s170 = sphi 0, %s169
      %s184 = sphi 0, %s170
      %s188 = sphi 0, %s188
      %s190 = sphi 0, %s188
      %s191 = sphi 0, %s190
      %s205 = sphi 0, %s191
      %s209 = sphi 0, %s209
      %s211 = sphi 0, %s209
      %s212 = sphi 0, %s211
      %s226 = sphi 0, %s212
      %s230 = sphi 0, %s230
      %s232 = sphi 0, %s230
      %s233 = sphi 0, %s232
      %s247 = sphi 0, %s233
      %s251 = sphi 0, %s251
      %s253 = sphi 0, %s251
      %s254 = sphi 0, %s253
      %s268 = sphi 0, %s254
      %s272 = sphi 0, %s272
      %s274 = sphi 0, %s272
      %s275 = sphi 0, %s274
      %s289 = sphi 0, %s275
      %s295 = sphi 0, %s297
      %s298 = sphi 0, %s295
      %s299 = sphi 0, %s298
      %s315 = sphi 0, %s299
      %s321 = sphi 0, %s323
      %s324 = sphi 0, %s321
      %s325 = sphi 0, %s324
      %s341 = sphi 0, %s325
    $region4: #{rag_forward.1} parent=1 // loop_header_branch
      %26 = sbr.rel (%p24) target = $region8
    $region5: #{rag_forward.1} parent=1 // loop_body
      %s28 = ssub.s32 %s23, 1
      %s29 = ssub.s32 %s23, 2
      %s30 = sadd.s32 %s23, 1
      %s31 = ssub.s32 %s23, %s30
      %p32 = scmp.eq.s32.totalorder %s31, 0
      %s34 = sadd.s32 %s33, 1
      %s35 = scalar_select %p32, %s33, %s34
      %p38 = pneg %p32
      %p39 = scmp.eq.s32.totalorder %s23, 1
      %p40 = por %p38, %p39
      %p41 = scmp.ne.s32.totalorder %s33, %s36
      %p42 = scmp.eq.s32.totalorder %s23, 0
      %p43 = por %p41, %p42
      %p44 = scmp.ne.s32.totalorder %s33, %s36
      %p45 = scmp.eq.s32.totalorder %s28, 1
      %p46 = por %p44, %p45
      %p47 = scmp.ne.s32.totalorder %s36, %s37
      %p48 = scmp.eq.s32.totalorder %s28, 0
      %p49 = por %p47, %p48
      %p50 = scmp.ne.s32.totalorder %s36, %s37
      %p51 = scmp.eq.s32.totalorder %s29, 1
      %p52 = por %p50, %p51
      %p54 = scmp.ne.s32.totalorder %s37, %s53
      %p55 = scmp.eq.s32.totalorder %s29, 0
      %p56 = por %p54, %p55
      %s57 = ssub.s32 %s23, %s30
      %p58 = scmp.eq.s32.totalorder %s57, 0
      %s60 = sadd.s32 %s59, 1
      %s61 = scalar_select %p58, %s59, %s60
      %p64 = pneg %p58
      %p65 = scmp.eq.s32.totalorder %s23, 1
      %p66 = por %p64, %p65
      %p67 = scmp.ne.s32.totalorder %s59, %s62
      %p68 = scmp.eq.s32.totalorder %s23, 0
      %p69 = por %p67, %p68
      %p70 = scmp.ne.s32.totalorder %s59, %s62
      %p71 = scmp.eq.s32.totalorder %s28, 1
      %p72 = por %p70, %p71
      %p73 = scmp.ne.s32.totalorder %s62, %s63
      %p74 = scmp.eq.s32.totalorder %s28, 0
      %p75 = por %p73, %p74
      %p76 = scmp.ne.s32.totalorder %s62, %s63
      %p77 = scmp.eq.s32.totalorder %s29, 1
      %p78 = por %p76, %p77
      %p80 = scmp.ne.s32.totalorder %s63, %s79
      %p81 = scmp.eq.s32.totalorder %s29, 0
      %p82 = por %p80, %p81
      %s84 = sadd.s32 %s83, 1
      %p87 = scmp.eq.s32.totalorder %s23, 1
      %p88 = scmp.ne.s32.totalorder %s83, %s85
      %p89 = scmp.eq.s32.totalorder %s23, 0
      %p90 = por %p88, %p89
      %p91 = scmp.ne.s32.totalorder %s83, %s85
      %p92 = scmp.eq.s32.totalorder %s28, 1
      %p93 = por %p91, %p92
      %p94 = scmp.ne.s32.totalorder %s85, %s86
      %p95 = scmp.eq.s32.totalorder %s28, 0
      %p96 = por %p94, %p95
      %p97 = scmp.ne.s32.totalorder %s85, %s86
      %p98 = scmp.eq.s32.totalorder %s29, 1
      %p99 = por %p97, %p98
      %p101 = scmp.ne.s32.totalorder %s86, %s100
      %p102 = scmp.eq.s32.totalorder %s29, 0
      %p103 = por %p101, %p102
      %s105 = sadd.s32 %s104, 1
      %p108 = scmp.eq.s32.totalorder %s23, 1
      %p109 = scmp.ne.s32.totalorder %s104, %s106
      %p110 = scmp.eq.s32.totalorder %s23, 0
      %p111 = por %p109, %p110
      %p112 = scmp.ne.s32.totalorder %s104, %s106
      %p113 = scmp.eq.s32.totalorder %s28, 1
      %p114 = por %p112, %p113
      %p115 = scmp.ne.s32.totalorder %s106, %s107
      %p116 = scmp.eq.s32.totalorder %s28, 0
      %p117 = por %p115, %p116
      %p118 = scmp.ne.s32.totalorder %s106, %s107
      %p119 = scmp.eq.s32.totalorder %s29, 1
      %p120 = por %p118, %p119
      %p122 = scmp.ne.s32.totalorder %s107, %s121
      %p123 = scmp.eq.s32.totalorder %s29, 0
      %p124 = por %p122, %p123
      %s126 = sadd.s32 %s125, 1
      %p129 = scmp.eq.s32.totalorder %s23, 1
      %p130 = scmp.ne.s32.totalorder %s125, %s127
      %p131 = scmp.eq.s32.totalorder %s23, 0
      %p132 = por %p130, %p131
      %p133 = scmp.ne.s32.totalorder %s125, %s127
      %p134 = scmp.eq.s32.totalorder %s28, 1
      %p135 = por %p133, %p134
      %p136 = scmp.ne.s32.totalorder %s127, %s128
      %p137 = scmp.eq.s32.totalorder %s28, 0
      %p138 = por %p136, %p137
      %p139 = scmp.ne.s32.totalorder %s127, %s128
      %p140 = scmp.eq.s32.totalorder %s29, 1
      %p141 = por %p139, %p140
      %p143 = scmp.ne.s32.totalorder %s128, %s142
      %p144 = scmp.eq.s32.totalorder %s29, 0
      %p145 = por %p143, %p144
      %s147 = sadd.s32 %s146, 1
      %p150 = scmp.eq.s32.totalorder %s23, 1
      %p151 = scmp.ne.s32.totalorder %s146, %s148
      %p152 = scmp.eq.s32.totalorder %s23, 0
      %p153 = por %p151, %p152
      %p154 = scmp.ne.s32.totalorder %s146, %s148
      %p155 = scmp.eq.s32.totalorder %s28, 1
      %p156 = por %p154, %p155
      %p157 = scmp.ne.s32.totalorder %s148, %s149
      %p158 = scmp.eq.s32.totalorder %s28, 0
      %p159 = por %p157, %p158
      %p160 = scmp.ne.s32.totalorder %s148, %s149
      %p161 = scmp.eq.s32.totalorder %s29, 1
      %p162 = por %p160, %p161
      %p164 = scmp.ne.s32.totalorder %s149, %s163
      %p165 = scmp.eq.s32.totalorder %s29, 0
      %p166 = por %p164, %p165
      %s168 = sadd.s32 %s167, 1
      %p171 = scmp.eq.s32.totalorder %s23, 1
      %p172 = scmp.ne.s32.totalorder %s167, %s169
      %p173 = scmp.eq.s32.totalorder %s23, 0
      %p174 = por %p172, %p173
      %p175 = scmp.ne.s32.totalorder %s167, %s169
      %p176 = scmp.eq.s32.totalorder %s28, 1
      %p177 = por %p175, %p176
      %p178 = scmp.ne.s32.totalorder %s169, %s170
      %p179 = scmp.eq.s32.totalorder %s28, 0
      %p180 = por %p178, %p179
      %p181 = scmp.ne.s32.totalorder %s169, %s170
      %p182 = scmp.eq.s32.totalorder %s29, 1
      %p183 = por %p181, %p182
      %p185 = scmp.ne.s32.totalorder %s170, %s184
      %p186 = scmp.eq.s32.totalorder %s29, 0
      %p187 = por %p185, %p186
      %s189 = sadd.s32 %s188, 1
      %p192 = scmp.eq.s32.totalorder %s23, 1
      %p193 = scmp.ne.s32.totalorder %s188, %s190
      %p194 = scmp.eq.s32.totalorder %s23, 0
      %p195 = por %p193, %p194
      %p196 = scmp.ne.s32.totalorder %s188, %s190
      %p197 = scmp.eq.s32.totalorder %s28, 1
      %p198 = por %p196, %p197
      %p199 = scmp.ne.s32.totalorder %s190, %s191
      %p200 = scmp.eq.s32.totalorder %s28, 0
      %p201 = por %p199, %p200
      %p202 = scmp.ne.s32.totalorder %s190, %s191
      %p203 = scmp.eq.s32.totalorder %s29, 1
      %p204 = por %p202, %p203
      %p206 = scmp.ne.s32.totalorder %s191, %s205
      %p207 = scmp.eq.s32.totalorder %s29, 0
      %p208 = por %p206, %p207
      %s210 = sadd.s32 %s209, 1
      %p213 = scmp.eq.s32.totalorder %s23, 1
      %p214 = scmp.ne.s32.totalorder %s209, %s211
      %p215 = scmp.eq.s32.totalorder %s23, 0
      %p216 = por %p214, %p215
      %p217 = scmp.ne.s32.totalorder %s209, %s211
      %p218 = scmp.eq.s32.totalorder %s28, 1
      %p219 = por %p217, %p218
      %p220 = scmp.ne.s32.totalorder %s211, %s212
      %p221 = scmp.eq.s32.totalorder %s28, 0
      %p222 = por %p220, %p221
      %p223 = scmp.ne.s32.totalorder %s211, %s212
      %p224 = scmp.eq.s32.totalorder %s29, 1
      %p225 = por %p223, %p224
      %p227 = scmp.ne.s32.totalorder %s212, %s226
      %p228 = scmp.eq.s32.totalorder %s29, 0
      %p229 = por %p227, %p228
      %s231 = sadd.s32 %s230, 1
      %p234 = scmp.eq.s32.totalorder %s23, 1
      %p235 = scmp.ne.s32.totalorder %s230, %s232
      %p236 = scmp.eq.s32.totalorder %s23, 0
      %p237 = por %p235, %p236
      %p238 = scmp.ne.s32.totalorder %s230, %s232
      %p239 = scmp.eq.s32.totalorder %s28, 1
      %p240 = por %p238, %p239
      %p241 = scmp.ne.s32.totalorder %s232, %s233
      %p242 = scmp.eq.s32.totalorder %s28, 0
      %p243 = por %p241, %p242
      %p244 = scmp.ne.s32.totalorder %s232, %s233
      %p245 = scmp.eq.s32.totalorder %s29, 1
      %p246 = por %p244, %p245
      %p248 = scmp.ne.s32.totalorder %s233, %s247
      %p249 = scmp.eq.s32.totalorder %s29, 0
      %p250 = por %p248, %p249
      %s252 = sadd.s32 %s251, 1
      %p255 = scmp.eq.s32.totalorder %s23, 1
      %p256 = scmp.ne.s32.totalorder %s251, %s253
      %p257 = scmp.eq.s32.totalorder %s23, 0
      %p258 = por %p256, %p257
      %p259 = scmp.ne.s32.totalorder %s251, %s253
      %p260 = scmp.eq.s32.totalorder %s28, 1
      %p261 = por %p259, %p260
      %p262 = scmp.ne.s32.totalorder %s253, %s254
      %p263 = scmp.eq.s32.totalorder %s28, 0
      %p264 = por %p262, %p263
      %p265 = scmp.ne.s32.totalorder %s253, %s254
      %p266 = scmp.eq.s32.totalorder %s29, 1
      %p267 = por %p265, %p266
      %p269 = scmp.ne.s32.totalorder %s254, %s268
      %p270 = scmp.eq.s32.totalorder %s29, 0
      %p271 = por %p269, %p270
      %s273 = sadd.s32 %s272, 1
      %p276 = scmp.eq.s32.totalorder %s23, 1
      %p277 = scmp.ne.s32.totalorder %s272, %s274
      %p278 = scmp.eq.s32.totalorder %s23, 0
      %p279 = por %p277, %p278
      %p280 = scmp.ne.s32.totalorder %s272, %s274
      %p281 = scmp.eq.s32.totalorder %s28, 1
      %p282 = por %p280, %p281
      %p283 = scmp.ne.s32.totalorder %s274, %s275
      %p284 = scmp.eq.s32.totalorder %s28, 0
      %p285 = por %p283, %p284
      %p286 = scmp.ne.s32.totalorder %s274, %s275
      %p287 = scmp.eq.s32.totalorder %s29, 1
      %p288 = por %p286, %p287
      %p290 = scmp.ne.s32.totalorder %s275, %s289
      %p291 = scmp.eq.s32.totalorder %s29, 0
      %p292 = por %p290, %p291
      %s293 = ssub.s32 %s23, %s30
      %p294 = scmp.eq.s32.totalorder %s293, 0
      %s296 = sadd.s32 %s295, 1
      %s297 = scalar_select %p294, %s295, %s296
      %p300 = pneg %p294
      %p301 = scmp.eq.s32.totalorder %s23, 1
      %p302 = por %p300, %p301
      %p303 = scmp.ne.s32.totalorder %s295, %s298
      %p304 = scmp.eq.s32.totalorder %s23, 0
      %p305 = por %p303, %p304
      %p306 = scmp.ne.s32.totalorder %s295, %s298
      %p307 = scmp.eq.s32.totalorder %s28, 1
      %p308 = por %p306, %p307
      %p309 = scmp.ne.s32.totalorder %s298, %s299
      %p310 = scmp.eq.s32.totalorder %s28, 0
      %p311 = por %p309, %p310
      %p312 = scmp.ne.s32.totalorder %s298, %s299
      %p313 = scmp.eq.s32.totalorder %s29, 1
      %p314 = por %p312, %p313
      %p316 = scmp.ne.s32.totalorder %s299, %s315
      %p317 = scmp.eq.s32.totalorder %s29, 0
      %p318 = por %p316, %p317
      %s319 = ssub.s32 %s23, %s30
      %p320 = scmp.eq.s32.totalorder %s319, 0
      %s322 = sadd.s32 %s321, 1
      %s323 = scalar_select %p320, %s321, %s322
      %p326 = pneg %p320
      %p327 = scmp.eq.s32.totalorder %s23, 1
      %p328 = por %p326, %p327
      %p329 = scmp.ne.s32.totalorder %s321, %s324
      %p330 = scmp.eq.s32.totalorder %s23, 0
      %p331 = por %p329, %p330
      %p332 = scmp.ne.s32.totalorder %s321, %s324
      %p333 = scmp.eq.s32.totalorder %s28, 1
      %p334 = por %p332, %p333
      %p335 = scmp.ne.s32.totalorder %s324, %s325
      %p336 = scmp.eq.s32.totalorder %s28, 0
      %p337 = por %p335, %p336
      %p338 = scmp.ne.s32.totalorder %s324, %s325
      %p339 = scmp.eq.s32.totalorder %s29, 1
      %p340 = por %p338, %p339
      %p342 = scmp.ne.s32.totalorder %s325, %s341
      %p343 = scmp.eq.s32.totalorder %s29, 0
      %p344 = por %p342, %p343
      %p345 = scmp.le.s32.totalorder 1, %s23
      %p346 = scmp.lt.s32.totalorder %s23, 3
      %p347 = pnand %p345, %p346
      %p348 = pneg %p347
      // Predicated region
      $region9: #{rag_forward.1} parent=5 // pred_check
        _
      $region10: #{rag_forward.1} parent=5 // pred_check_branch
        %350 = sbr.rel (%p347) target = $region12
      $region11: #{rag_forward.1} parent=5 // pred_region
        %s351 = ssub.s32 %s23, 1
        // Predicated region
        $region13: #{rag_forward.1} parent=11 // pred_check
          %p352 = pneg %p96
        $region14: #{rag_forward.1} parent=11 // pred_check_branch
          %354 = sbr.rel (%p352) target = $region16
        $region15: #{rag_forward.1} parent=11 // pred_region
          _
        $region16: #{rag_forward.1} parent=11 // pred_fallthru
          _
        // Predicated region
        $region17: #{rag_forward.1} parent=11 // pred_check
          %p355 = pneg %p117
        $region18: #{rag_forward.1} parent=11 // pred_check_branch
          %357 = sbr.rel (%p355) target = $region20
        $region19: #{rag_forward.1} parent=11 // pred_region
          _
        $region20: #{rag_forward.1} parent=11 // pred_fallthru
          _
        // Predicated region
        $region21: #{rag_forward.1} parent=11 // pred_check
          %p358 = pneg %p138
        $region22: #{rag_forward.1} parent=11 // pred_check_branch
          %360 = sbr.rel (%p358) target = $region24
        $region23: #{rag_forward.1} parent=11 // pred_region
          _
        $region24: #{rag_forward.1} parent=11 // pred_fallthru
          _
        // Predicated region
        $region25: #{rag_forward.1} parent=11 // pred_check
          %p361 = pneg %p159
        $region26: #{rag_forward.1} parent=11 // pred_check_branch
          %363 = sbr.rel (%p361) target = $region28
        $region27: #{rag_forward.1} parent=11 // pred_region
          _
        $region28: #{rag_forward.1} parent=11 // pred_fallthru
          _
        // Predicated region
        $region29: #{rag_forward.1} parent=11 // pred_check
          %p364 = pneg %p180
        $region30: #{rag_forward.1} parent=11 // pred_check_branch
          %366 = sbr.rel (%p364) target = $region32
        $region31: #{rag_forward.1} parent=11 // pred_region
          _
        $region32: #{rag_forward.1} parent=11 // pred_fallthru
          _
        // Predicated region
        $region33: #{rag_forward.1} parent=11 // pred_check
          %p367 = pneg %p201
        $region34: #{rag_forward.1} parent=11 // pred_check_branch
          %369 = sbr.rel (%p367) target = $region36
        $region35: #{rag_forward.1} parent=11 // pred_region
          _
        $region36: #{rag_forward.1} parent=11 // pred_fallthru
          _
        // Predicated region
        $region37: #{rag_forward.1} parent=11 // pred_check
          %p370 = pneg %p222
        $region38: #{rag_forward.1} parent=11 // pred_check_branch
          %372 = sbr.rel (%p370) target = $region40
        $region39: #{rag_forward.1} parent=11 // pred_region
          _
        $region40: #{rag_forward.1} parent=11 // pred_fallthru
          _
        // Predicated region
        $region41: #{rag_forward.1} parent=11 // pred_check
          %p373 = pneg %p243
        $region42: #{rag_forward.1} parent=11 // pred_check_branch
          %375 = sbr.rel (%p373) target = $region44
        $region43: #{rag_forward.1} parent=11 // pred_region
          _
        $region44: #{rag_forward.1} parent=11 // pred_fallthru
          _
        // Predicated region
        $region45: #{rag_forward.1} parent=11 // pred_check
          %p376 = pneg %p264
        $region46: #{rag_forward.1} parent=11 // pred_check_branch
          %378 = sbr.rel (%p376) target = $region48
        $region47: #{rag_forward.1} parent=11 // pred_region
          _
        $region48: #{rag_forward.1} parent=11 // pred_fallthru
          _
        // Predicated region
        $region49: #{rag_forward.1} parent=11 // pred_check
          %p379 = pneg %p285
        $region50: #{rag_forward.1} parent=11 // pred_check_branch
          %381 = sbr.rel (%p379) target = $region52
        $region51: #{rag_forward.1} parent=11 // pred_region
          _
        $region52: #{rag_forward.1} parent=11 // pred_fallthru
          _
      $region12: #{rag_forward.1} parent=5 // pred_fallthru
        _
      %p382 = scmp.lt.s32.totalorder %s23, 2
      // Predicated region
      $region53: #{rag_forward.1} parent=5 // pred_check
        %p383 = pneg %p382
      $region54: #{rag_forward.1} parent=5 // pred_check_branch
        %385 = sbr.rel (%p383) target = $region56
      $region55: #{rag_forward.1} parent=5 // pred_region
        // Predicated region
        $region57: #{rag_forward.1} parent=55 // pred_check
          %p386 = pneg %p43
        $region58: #{rag_forward.1} parent=55 // pred_check_branch
          %388 = sbr.rel (%p386) target = $region60
        $region59: #{rag_forward.1} parent=55 // pred_region
          %s389 = smul.u32 8, %s23
          %p390 = scmp.lt.s32.totalorder %s389, 15
          %s391 = scalar_select %p390, %s389, 15
          %s392 = smul.addr %s391, 8
          %s393 = scalar_lea.vmem %s0, %s392
          %s394 = smul.u32 8, %s23
        $region60: #{rag_forward.1} parent=55 // pred_fallthru
          _
        // Predicated region
        $region61: #{rag_forward.1} parent=55 // pred_check
          %p395 = pneg %p69
        $region62: #{rag_forward.1} parent=55 // pred_check_branch
          %397 = sbr.rel (%p395) target = $region64
        $region63: #{rag_forward.1} parent=55 // pred_region
          %s398 = smul.u32 48, %s23
          %p399 = scmp.lt.s32.totalorder %s398, 95
          %s400 = scalar_select %p399, %s398, 95
          %s401 = smul.addr %s400, 8
          %s402 = scalar_lea.vmem %s1, %s401
          %s403 = smul.u32 48, %s23
        $region64: #{rag_forward.1} parent=55 // pred_fallthru
          _
      $region56: #{rag_forward.1} parent=5 // pred_fallthru
        _
      %p404 = scmp.le.s32.totalorder 1, %s23
      %p405 = scmp.lt.s32.totalorder %s23, 3
      %p406 = pnand %p404, %p405
      %p407 = pneg %p406
      // Predicated region
      $region65: #{rag_forward.1} parent=5 // pred_check
        _
      $region66: #{rag_forward.1} parent=5 // pred_check_branch
        %409 = sbr.rel (%p406) target = $region68
      $region67: #{rag_forward.1} parent=5 // pred_region
        %s410 = ssub.s32 %s23, 1
        %s411 = smul.u32 8, %s28
        %p412 = scmp.lt.s32.totalorder %s411, 15
        %s413 = scalar_select %p412, %s411, 15
        %s414 = smul.addr %s413, 8
        %s415 = scalar_lea.vmem %s0, %s414
        %p416 = pneg %p49
        %p417 = pneg %p46
        %s418 = smul.u32 48, %s28
        %p419 = scmp.lt.s32.totalorder %s418, 95
        %s420 = scalar_select %p419, %s418, 95
        %s421 = smul.addr %s420, 8
        %s422 = scalar_lea.vmem %s1, %s421
        %p423 = pneg %p75
        %p424 = pneg %p72
        %p425 = pneg %p96
        %p426 = pneg %p93
        %p427 = pneg %p117
        %p428 = pneg %p114
        %p429 = pneg %p138
        %p430 = pneg %p135
        %p431 = pneg %p159
        %p432 = pneg %p156
        %p433 = pneg %p180
        %p434 = pneg %p177
        %p435 = pneg %p201
        %p436 = pneg %p198
        %p437 = pneg %p222
        %p438 = pneg %p219
        %p439 = pneg %p243
        %p440 = pneg %p240
        %p441 = pneg %p264
        %p442 = pneg %p261
        %p443 = pneg %p285
        %p444 = pneg %p282
        %p445 = pneg %p311
        %p446 = pneg %p308
        %s447 = sand.u32 %s298, 1
        %s448 = scalar_lea.sflag [#allocation3], %s447
        %s449 = sand.u32 %s298, 1
        %s450 = smul.addr %s449, 8
        %s451 = scalar_lea.vmem [#allocation2], %s450
        %p452 = pneg %p337
        %p453 = pneg %p334
        %p454 = scmp.lt.s32.totalorder %s28, 1
        %s455 = scalar_select %p454, %s28, 1
        %s456 = smul.addr %s455, 8
        %s457 = scalar_lea.vmem %s13, %s456
        %s458 = smul.u32 8, %s28
        %p459 = scmp.lt.s32.totalorder %s458, 15
        %s460 = scalar_select %p459, %s458, 15
        %s461 = smul.addr %s460, 8
        %s462 = scalar_lea.vmem %s0, %s461
        %s463 = smul.u32 8, %s28
        %s464 = smul.u32 48, %s28
        %p465 = scmp.lt.s32.totalorder %s464, 95
        %s466 = scalar_select %p465, %s464, 95
        %s467 = smul.addr %s466, 8
        %s468 = scalar_lea.vmem %s1, %s467
        %s469 = smul.u32 48, %s28
        %p470 = scmp.lt.s32.totalorder %s28, 1
        %s471 = scalar_select %p470, %s28, 1
        %s472 = smul.addr %s471, 8
        %s473 = scalar_lea.vmem %s13, %s472
        %v474 = vld [vmem:[%s462] sm:$0xff]
        %v475 = vld [vmem:[%s462 + $0x8] sm:$0xff]
        %v476 = vld [vmem:[%s462 + $0x10] sm:$0xff]
        %v477 = vld [vmem:[%s462 + $0x18] sm:$0xff]
        %v478 = vld [vmem:[%s462 + $0x20] sm:$0xff]
        %v479 = vld [vmem:[%s462 + $0x28] sm:$0xff]
        %v480 = vld [vmem:[%s462 + $0x30] sm:$0xff]
        %v481 = vld [vmem:[%s462 + $0x38] sm:$0xff]
        %v482 = vld [vmem:[%s2] sm:$0xff]
        %v483 = vld [vmem:[%s2 + $0x8] sm:$0xff]
        %v484 = vld [vmem:[%s2 + $0x10] sm:$0xff]
        %v485 = vld [vmem:[%s2 + $0x18] sm:$0xff]
        %v486 = vld [vmem:[%s2 + $0x20] sm:$0xff]
        %v487 = vld [vmem:[%s2 + $0x28] sm:$0xff]
        %v488 = vld [vmem:[%s2 + $0x30] sm:$0xff]
        %v489 = vld [vmem:[%s2 + $0x38] sm:$0xff]
        %v490 = vld [vmem:[%s2 + $0x40] sm:$0xff]
        %v491 = vld [vmem:[%s2 + $0x48] sm:$0xff]
        %v492 = vld [vmem:[%s2 + $0x50] sm:$0xff]
        %v493 = vld [vmem:[%s2 + $0x58] sm:$0xff]
        %v494 = vld [vmem:[%s2 + $0x60] sm:$0xff]
        %v495 = vld [vmem:[%s2 + $0x68] sm:$0xff]
        %v496 = vld [vmem:[%s2 + $0x70] sm:$0xff]
        %v497 = vld [vmem:[%s2 + $0x78] sm:$0xff]
        %v498 = vld [vmem:[%s3] sm:$0x1]
        %v500 = vlaneseq
        %v501 = vshrl.u32 %v500, 7
        %v502 = vsub.s32 0, %v501
        %v503 = vrot.slane %v498, %v502
        %505 = vmatprep.subr.mxu0 0.0
        %506 = vmatpush1.msra.mxu0 %v482
        %507 = vmatprep.subr.mxu0 0.0
        %508 = vmatpush1.msra.mxu0 %v483
        %509 = vmatprep.subr.mxu0 0.0
        %510 = vmatpush1.msra.mxu0 %v484
        %511 = vmatprep.subr.mxu0 0.0
        %512 = vmatpush1.msra.mxu0 %v485
        %513 = vmatprep.subr.mxu0 0.0
        %514 = vmatpush1.msra.mxu0 %v486
        %515 = vmatprep.subr.mxu0 0.0
        %516 = vmatpush1.msra.mxu0 %v487
        %517 = vmatprep.subr.mxu0 0.0
        %518 = vmatpush1.msra.mxu0 %v488
        %519 = vmatprep.subr.mxu0 0.0
        %520 = vmatpush1.msra.mxu0 %v489
        %521 = vmatprep.subr.mxu0 0.0
        %522 = vmatpush1.msra.mxu0 %v490
        %523 = vmatprep.subr.mxu0 0.0
        %524 = vmatpush1.msra.mxu0 %v491
        %525 = vmatprep.subr.mxu0 0.0
        %526 = vmatpush1.msra.mxu0 %v492
        %527 = vmatprep.subr.mxu0 0.0
        %528 = vmatpush1.msra.mxu0 %v493
        %529 = vmatprep.subr.mxu0 0.0
        %530 = vmatpush1.msra.mxu0 %v494
        %531 = vmatprep.subr.mxu0 0.0
        %532 = vmatpush1.msra.mxu0 %v495
        %533 = vmatprep.subr.mxu0 0.0
        %534 = vmatpush1.msra.mxu0 %v496
        %535 = vmatprep.subr.mxu0 0.0
        %536 = vmatpush1.msra.mxu0 %v497
        %537 = vmatprep.subr.mxu0 0.0
        %538 = vmatpush1.msra.mxu0 0.0
        %539 = vmatprep.subr.mxu0 0.0
        %540 = vmatpush1.msra.mxu0 0.0
        %541 = vmatprep.subr.mxu0 0.0
        %542 = vmatpush1.msra.mxu0 0.0
        %543 = vmatprep.subr.mxu0 0.0
        %544 = vmatpush1.msra.mxu0 0.0
        %545 = vmatprep.subr.mxu0 0.0
        %546 = vmatpush1.msra.mxu0 0.0
        %547 = vmatprep.subr.mxu0 0.0
        %548 = vmatpush1.msra.mxu0 0.0
        %549 = vmatprep.subr.mxu0 0.0
        %550 = vmatpush1.msra.mxu0 0.0
        %551 = vmatprep.subr.mxu0 0.0
        %552 = vmatpush1.msra.mxu0 0.0
        %553 = vmatprep.subr.mxu0 0.0
        %554 = vmatpush1.msra.mxu0 0.0
        %555 = vmatprep.subr.mxu0 0.0
        %556 = vmatpush1.msra.mxu0 0.0
        %557 = vmatprep.subr.mxu0 0.0
        %558 = vmatpush1.msra.mxu0 0.0
        %559 = vmatprep.subr.mxu0 0.0
        %560 = vmatpush1.msra.mxu0 0.0
        %561 = vmatprep.subr.mxu0 0.0
        %562 = vmatpush1.msra.mxu0 0.0
        %563 = vmatprep.subr.mxu0 0.0
        %564 = vmatpush1.msra.mxu0 0.0
        %565 = vmatprep.subr.mxu0 0.0
        %566 = vmatpush1.msra.mxu0 0.0
        %567 = vmatprep.subr.mxu0 0.0
        %568 = vmatpush1.msra.mxu0 0.0
        %569 = vmatprep.mubr.f32.mxu0 0.0
        %570 = vmatmul.mubr.f32.gmra.mrb[0].mxu0 %v474
        %v571 = vpop.f32.mrb[0].mxu0
        %v572 = vadd.f32 %v503, %v571
        %v573 = vpop.f32.mrb[0].mxu0
        %574 = vmatprep.mubr.f32.mxu0 0.0
        %575 = vmatmul.mubr.f32.gmra.mrb[0].mxu0 %v475
        %v576 = vpop.f32.mrb[0].mxu0
        %v577 = vadd.f32 %v503, %v576
        %v578 = vpop.f32.mrb[0].mxu0
        %579 = vmatprep.mubr.f32.mxu0 0.0
        %580 = vmatmul.mubr.f32.gmra.mrb[0].mxu0 %v476
        %v581 = vpop.f32.mrb[0].mxu0
        %v582 = vadd.f32 %v503, %v581
        %v583 = vpop.f32.mrb[0].mxu0
        %584 = vmatprep.mubr.f32.mxu0 0.0
        %585 = vmatmul.mubr.f32.gmra.mrb[0].mxu0 %v477
        %v586 = vpop.f32.mrb[0].mxu0
        %v587 = vadd.f32 %v503, %v586
        %v588 = vpop.f32.mrb[0].mxu0
        %589 = vmatprep.mubr.f32.mxu0 0.0
        %590 = vmatmul.mubr.f32.gmra.mrb[0].mxu0 %v478
        %v591 = vpop.f32.mrb[0].mxu0
        %v592 = vadd.f32 %v503, %v591
        %v593 = vpop.f32.mrb[0].mxu0
        %594 = vmatprep.mubr.f32.mxu0 0.0
        %595 = vmatmul.mubr.f32.gmra.mrb[0].mxu0 %v479
        %v596 = vpop.f32.mrb[0].mxu0
        %v597 = vadd.f32 %v503, %v596
        %v598 = vpop.f32.mrb[0].mxu0
        %599 = vmatprep.mubr.f32.mxu0 0.0
        %600 = vmatmul.mubr.f32.gmra.mrb[0].mxu0 %v480
        %v601 = vpop.f32.mrb[0].mxu0
        %v602 = vadd.f32 %v503, %v601
        %v603 = vpop.f32.mrb[0].mxu0
        %604 = vmatprep.mubr.f32.mxu0 0.0
        %605 = vmatmul.mubr.f32.gmra.mrb[0].mxu0 %v481
        %v606 = vpop.f32.mrb[0].mxu0
        %v607 = vadd.f32 %v503, %v606
        %v608 = vpop.f32.mrb[0].mxu0
        %609 = vdwg.mxu0
        %v610 = vtanh.pop %v572
        %v611 = vtanh.pop %v577
        %v612 = vtanh.pop %v582
        %v613 = vtanh.pop %v587
        %v614 = vtanh.pop %v592
        %v615 = vtanh.pop %v597
        %v616 = vtanh.pop %v602
        %v617 = vtanh.pop %v607
        %v618 = vld [vmem:[%s8] sm:$0xff]
        %vm619 = vcmask 523264
        %v621 = vsel %vm619, %v618, 0
        %623 = vmatprep.subr.mxu0 0.0
        %624 = vmatpush1.msra.mxu0 %v610
        %625 = vmatprep.subr.mxu0 0.0
        %626 = vmatpush1.msra.mxu0 %v611
        %627 = vmatprep.subr.mxu0 0.0
        %628 = vmatpush1.msra.mxu0 %v612
        %629 = vmatprep.subr.mxu0 0.0
        %630 = vmatpush1.msra.mxu0 %v613
        %631 = vmatprep.subr.mxu0 0.0
        %632 = vmatpush1.msra.mxu0 %v614
        %633 = vmatprep.subr.mxu0 0.0
        %634 = vmatpush1.msra.mxu0 %v615
        %635 = vmatprep.subr.mxu0 0.0
        %636 = vmatpush1.msra.mxu0 %v616
        %637 = vmatprep.subr.mxu0 0.0
        %638 = vmatpush1.msra.mxu0 %v617
        %639 = vmatprep.subr.mxu0 0.0
        %640 = vmatpush1.msra.mxu0 0.0
        %641 = vmatprep.subr.mxu0 0.0
        %642 = vmatpush1.msra.mxu0 0.0
        %643 = vmatprep.subr.mxu0 0.0
        %644 = vmatpush1.msra.mxu0 0.0
        %645 = vmatprep.subr.mxu0 0.0
        %646 = vmatpush1.msra.mxu0 0.0
        %647 = vmatprep.subr.mxu0 0.0
        %648 = vmatpush1.msra.mxu0 0.0
        %649 = vmatprep.subr.mxu0 0.0
        %650 = vmatpush1.msra.mxu0 0.0
        %651 = vmatprep.subr.mxu0 0.0
        %652 = vmatpush1.msra.mxu0 0.0
        %653 = vmatprep.subr.mxu0 0.0
        %654 = vmatpush1.msra.mxu0 0.0
        %655 = vmatprep.subr.mxu0 0.0
        %656 = vmatpush1.msra.mxu0 0.0
        %657 = vmatprep.subr.mxu0 0.0
        %658 = vmatpush1.msra.mxu0 0.0
        %659 = vmatprep.subr.mxu0 0.0
        %660 = vmatpush1.msra.mxu0 0.0
        %661 = vmatprep.subr.mxu0 0.0
        %662 = vmatpush1.msra.mxu0 0.0
        %663 = vmatprep.subr.mxu0 0.0
        %664 = vmatpush1.msra.mxu0 0.0
        %665 = vmatprep.subr.mxu0 0.0
        %666 = vmatpush1.msra.mxu0 0.0
        %667 = vmatprep.subr.mxu0 0.0
        %668 = vmatpush1.msra.mxu0 0.0
        %669 = vmatprep.subr.mxu0 0.0
        %670 = vmatpush1.msra.mxu0 0.0
        %671 = vmatprep.subr.mxu0 0.0
        %672 = vmatpush1.msra.mxu0 0.0
        %673 = vmatprep.subr.mxu0 0.0
        %674 = vmatpush1.msra.mxu0 0.0
        %675 = vmatprep.subr.mxu0 0.0
        %676 = vmatpush1.msra.mxu0 0.0
        %677 = vmatprep.subr.mxu0 0.0
        %678 = vmatpush1.msra.mxu0 0.0
        %679 = vmatprep.subr.mxu0 0.0
        %680 = vmatpush1.msra.mxu0 0.0
        %681 = vmatprep.subr.mxu0 0.0
        %682 = vmatpush1.msra.mxu0 0.0
        %683 = vmatprep.subr.mxu0 0.0
        %684 = vmatpush1.msra.mxu0 0.0
        %685 = vmatprep.subr.mxu0 0.0
        %686 = vmatpush1.msra.mxu0 0.0
        %687 = vmatprep.mubr.f32.mxu0 0.0
        %688 = vmatmul.mubr.f32.gmra.mrb[0].mxu0 %v621
        %v689 = vpop.f32.mrb[0].mxu0
        %v690 = vadd.f32 0.0, %v689
        %v691 = vpop.f32.mrb[0].mxu0
        %692 = vdwg.mxu0
        %v693 = vld [vmem:[%s468] sm:$0xff]
        %v694 = vld [vmem:[%s468 + $0x8] sm:$0xff]
        %v695 = vld [vmem:[%s468 + $0x10] sm:$0xff]
        %v696 = vld [vmem:[%s468 + $0x18] sm:$0xff]
        %v697 = vld [vmem:[%s468 + $0x20] sm:$0xff]
        %v698 = vld [vmem:[%s468 + $0x28] sm:$0xff]
        %v699 = vld [vmem:[%s468 + $0x30] sm:$0xff]
        %v700 = vld [vmem:[%s468 + $0x38] sm:$0xff]
        %v701 = vld [vmem:[%s468 + $0x40] sm:$0xff]
        %v702 = vld [vmem:[%s468 + $0x48] sm:$0xff]
        %v703 = vld [vmem:[%s468 + $0x50] sm:$0xff]
        %v704 = vld [vmem:[%s468 + $0x58] sm:$0xff]
        %v705 = vld [vmem:[%s468 + $0x60] sm:$0xff]
        %v706 = vld [vmem:[%s468 + $0x68] sm:$0xff]
        %v707 = vld [vmem:[%s468 + $0x70] sm:$0xff]
        %v708 = vld [vmem:[%s468 + $0x78] sm:$0xff]
        %v709 = vld [vmem:[%s468 + $0x80] sm:$0xff]
        %v710 = vld [vmem:[%s468 + $0x88] sm:$0xff]
        %v711 = vld [vmem:[%s468 + $0x90] sm:$0xff]
        %v712 = vld [vmem:[%s468 + $0x98] sm:$0xff]
        %v713 = vld [vmem:[%s468 + $0xa0] sm:$0xff]
        %v714 = vld [vmem:[%s468 + $0xa8] sm:$0xff]
        %v715 = vld [vmem:[%s468 + $0xb0] sm:$0xff]
        %v716 = vld [vmem:[%s468 + $0xb8] sm:$0xff]
        %v717 = vld [vmem:[%s468 + $0xc0] sm:$0xff]
        %v718 = vld [vmem:[%s468 + $0xc8] sm:$0xff]
        %v719 = vld [vmem:[%s468 + $0xd0] sm:$0xff]
        %v720 = vld [vmem:[%s468 + $0xd8] sm:$0xff]
        %v721 = vld [vmem:[%s468 + $0xe0] sm:$0xff]
        %v722 = vld [vmem:[%s468 + $0xe8] sm:$0xff]
        %v723 = vld [vmem:[%s468 + $0xf0] sm:$0xff]
        %v724 = vld [vmem:[%s468 + $0xf8] sm:$0xff]
        %v725 = vld [vmem:[%s468 + $0x100] sm:$0xff]
        %v726 = vld [vmem:[%s468 + $0x108] sm:$0xff]
        %v727 = vld [vmem:[%s468 + $0x110] sm:$0xff]
        %v728 = vld [vmem:[%s468 + $0x118] sm:$0xff]
        %v729 = vld [vmem:[%s468 + $0x120] sm:$0xff]
        %v730 = vld [vmem:[%s468 + $0x128] sm:$0xff]
        %v731 = vld [vmem:[%s468 + $0x130] sm:$0xff]
        %v732 = vld [vmem:[%s468 + $0x138] sm:$0xff]
        %v733 = vld [vmem:[%s468 + $0x140] sm:$0xff]
        %v734 = vld [vmem:[%s468 + $0x148] sm:$0xff]
        %v735 = vld [vmem:[%s468 + $0x150] sm:$0xff]
        %v736 = vld [vmem:[%s468 + $0x158] sm:$0xff]
        %v737 = vld [vmem:[%s468 + $0x160] sm:$0xff]
        %v738 = vld [vmem:[%s468 + $0x168] sm:$0xff]
        %v739 = vld [vmem:[%s468 + $0x170] sm:$0xff]
        %v740 = vld [vmem:[%s468 + $0x178] sm:$0xff]
        %v741 = vld [vmem:[%s4] sm:$0xff]
        %v742 = vld [vmem:[%s4 + $0x8] sm:$0xff]
        %v743 = vld [vmem:[%s4 + $0x10] sm:$0xff]
        %v744 = vld [vmem:[%s4 + $0x18] sm:$0xff]
        %v745 = vld [vmem:[%s4 + $0x20] sm:$0xff]
        %v746 = vld [vmem:[%s4 + $0x28] sm:$0xff]
        %v747 = vld [vmem:[%s4 + $0x30] sm:$0xff]
        %v748 = vld [vmem:[%s4 + $0x38] sm:$0xff]
        %v749 = vld [vmem:[%s4 + $0x40] sm:$0xff]
        %v750 = vld [vmem:[%s4 + $0x48] sm:$0xff]
        %v751 = vld [vmem:[%s4 + $0x50] sm:$0xff]
        %v752 = vld [vmem:[%s4 + $0x58] sm:$0xff]
        %v753 = vld [vmem:[%s4 + $0x60] sm:$0xff]
        %v754 = vld [vmem:[%s4 + $0x68] sm:$0xff]
        %v755 = vld [vmem:[%s4 + $0x70] sm:$0xff]
        %v756 = vld [vmem:[%s4 + $0x78] sm:$0xff]
        %v757 = vld [vmem:[%s5] sm:$0x1]
        %v759 = vlaneseq
        %v760 = vshrl.u32 %v759, 7
        %v761 = vsub.s32 0, %v760
        %v762 = vrot.slane %v757, %v761
        %764 = vmatprep.subr.mxu0 0.0
        %765 = vmatpush1.msra.mxu0 %v741
        %766 = vmatprep.subr.mxu0 0.0
        %767 = vmatpush1.msra.mxu0 %v742
        %768 = vmatprep.subr.mxu0 0.0
        %769 = vmatpush1.msra.mxu0 %v743
        %770 = vmatprep.subr.mxu0 0.0
        %771 = vmatpush1.msra.mxu0 %v744
        %772 = vmatprep.subr.mxu0 0.0
        %773 = vmatpush1.msra.mxu0 %v745
        %774 = vmatprep.subr.mxu0 0.0
        %775 = vmatpush1.msra.mxu0 %v746
        %776 = vmatprep.subr.mxu0 0.0
        %777 = vmatpush1.msra.mxu0 %v747
        %778 = vmatprep.subr.mxu0 0.0
        %779 = vmatpush1.msra.mxu0 %v748
        %780 = vmatprep.subr.mxu0 0.0
        %781 = vmatpush1.msra.mxu0 %v749
        %782 = vmatprep.subr.mxu0 0.0
        %783 = vmatpush1.msra.mxu0 %v750
        %784 = vmatprep.subr.mxu0 0.0
        %785 = vmatpush1.msra.mxu0 %v751
        %786 = vmatprep.subr.mxu0 0.0
        %787 = vmatpush1.msra.mxu0 %v752
        %788 = vmatprep.subr.mxu0 0.0
        %789 = vmatpush1.msra.mxu0 %v753
        %790 = vmatprep.subr.mxu0 0.0
        %791 = vmatpush1.msra.mxu0 %v754
        %792 = vmatprep.subr.mxu0 0.0
        %793 = vmatpush1.msra.mxu0 %v755
        %794 = vmatprep.subr.mxu0 0.0
        %795 = vmatpush1.msra.mxu0 %v756
        %796 = vmatprep.subr.mxu0 0.0
        %797 = vmatpush1.msra.mxu0 0.0
        %798 = vmatprep.subr.mxu0 0.0
        %799 = vmatpush1.msra.mxu0 0.0
        %800 = vmatprep.subr.mxu0 0.0
        %801 = vmatpush1.msra.mxu0 0.0
        %802 = vmatprep.subr.mxu0 0.0
        %803 = vmatpush1.msra.mxu0 0.0
        %804 = vmatprep.subr.mxu0 0.0
        %805 = vmatpush1.msra.mxu0 0.0
        %806 = vmatprep.subr.mxu0 0.0
        %807 = vmatpush1.msra.mxu0 0.0
        %808 = vmatprep.subr.mxu0 0.0
        %809 = vmatpush1.msra.mxu0 0.0
        %810 = vmatprep.subr.mxu0 0.0
        %811 = vmatpush1.msra.mxu0 0.0
        %812 = vmatprep.subr.mxu0 0.0
        %813 = vmatpush1.msra.mxu0 0.0
        %814 = vmatprep.subr.mxu0 0.0
        %815 = vmatpush1.msra.mxu0 0.0
        %816 = vmatprep.subr.mxu0 0.0
        %817 = vmatpush1.msra.mxu0 0.0
        %818 = vmatprep.subr.mxu0 0.0
        %819 = vmatpush1.msra.mxu0 0.0
        %820 = vmatprep.subr.mxu0 0.0
        %821 = vmatpush1.msra.mxu0 0.0
        %822 = vmatprep.subr.mxu0 0.0
        %823 = vmatpush1.msra.mxu0 0.0
        %824 = vmatprep.subr.mxu0 0.0
        %825 = vmatpush1.msra.mxu0 0.0
        %826 = vmatprep.subr.mxu0 0.0
        %827 = vmatpush1.msra.mxu0 0.0
        %828 = vmatprep.mubr.f32.mxu0 0.0
        %829 = vmatmul.mubr.f32.gmra.mrb[0].mxu0 %v693
        %v830 = vpop.f32.mrb[0].mxu0
        %v831 = vadd.f32 %v762, %v830
        %v832 = vpop.f32.mrb[0].mxu0
        %833 = vmatprep.mubr.f32.mxu0 0.0
        %834 = vmatmul.mubr.f32.gmra.mrb[0].mxu0 %v694
        %v835 = vpop.f32.mrb[0].mxu0
        %v836 = vadd.f32 %v762, %v835
        %v837 = vpop.f32.mrb[0].mxu0
        %838 = vmatprep.mubr.f32.mxu0 0.0
        %839 = vmatmul.mubr.f32.gmra.mrb[0].mxu0 %v695
        %v840 = vpop.f32.mrb[0].mxu0
        %v841 = vadd.f32 %v762, %v840
        %v842 = vpop.f32.mrb[0].mxu0
        %843 = vmatprep.mubr.f32.mxu0 0.0
        %844 = vmatmul.mubr.f32.gmra.mrb[0].mxu0 %v696
        %v845 = vpop.f32.mrb[0].mxu0
        %v846 = vadd.f32 %v762, %v845
        %v847 = vpop.f32.mrb[0].mxu0
        %848 = vmatprep.mubr.f32.mxu0 0.0
        %849 = vmatmul.mubr.f32.gmra.mrb[0].mxu0 %v697
        %v850 = vpop.f32.mrb[0].mxu0
        %v851 = vadd.f32 %v762, %v850
        %v852 = vpop.f32.mrb[0].mxu0
        %853 = vmatprep.mubr.f32.mxu0 0.0
        %854 = vmatmul.mubr.f32.gmra.mrb[0].mxu0 %v698
        %v855 = vpop.f32.mrb[0].mxu0
        %v856 = vadd.f32 %v762, %v855
        %v857 = vpop.f32.mrb[0].mxu0
        %858 = vmatprep.mubr.f32.mxu0 0.0
        %859 = vmatmul.mubr.f32.gmra.mrb[0].mxu0 %v699
        %v860 = vpop.f32.mrb[0].mxu0
        %v861 = vadd.f32 %v762, %v860
        %v862 = vpop.f32.mrb[0].mxu0
        %863 = vmatprep.mubr.f32.mxu0 0.0
        %864 = vmatmul.mubr.f32.gmra.mrb[0].mxu0 %v700
        %v865 = vpop.f32.mrb[0].mxu0
        %v866 = vadd.f32 %v762, %v865
        %v867 = vpop.f32.mrb[0].mxu0
        %868 = vmatprep.mubr.f32.mxu0 0.0
        %869 = vmatmul.mubr.f32.gmra.mrb[0].mxu0 %v701
        %v870 = vpop.f32.mrb[0].mxu0
        %v871 = vadd.f32 %v762, %v870
        %v872 = vpop.f32.mrb[0].mxu0
        %873 = vmatprep.mubr.f32.mxu0 0.0
        %874 = vmatmul.mubr.f32.gmra.mrb[0].mxu0 %v702
        %v875 = vpop.f32.mrb[0].mxu0
        %v876 = vadd.f32 %v762, %v875
        %v877 = vpop.f32.mrb[0].mxu0
        %878 = vmatprep.mubr.f32.mxu0 0.0
        %879 = vmatmul.mubr.f32.gmra.mrb[0].mxu0 %v703
        %v880 = vpop.f32.mrb[0].mxu0
        %v881 = vadd.f32 %v762, %v880
        %v882 = vpop.f32.mrb[0].mxu0
        %883 = vmatprep.mubr.f32.mxu0 0.0
        %884 = vmatmul.mubr.f32.gmra.mrb[0].mxu0 %v704
        %v885 = vpop.f32.mrb[0].mxu0
        %v886 = vadd.f32 %v762, %v885
        %v887 = vpop.f32.mrb[0].mxu0
        %888 = vmatprep.mubr.f32.mxu0 0.0
        %889 = vmatmul.mubr.f32.gmra.mrb[0].mxu0 %v705
        %v890 = vpop.f32.mrb[0].mxu0
        %v891 = vadd.f32 %v762, %v890
        %v892 = vpop.f32.mrb[0].mxu0
        %893 = vmatprep.mubr.f32.mxu0 0.0
        %894 = vmatmul.mubr.f32.gmra.mrb[0].mxu0 %v706
        %v895 = vpop.f32.mrb[0].mxu0
        %v896 = vadd.f32 %v762, %v895
        %v897 = vpop.f32.mrb[0].mxu0
        %898 = vmatprep.mubr.f32.mxu0 0.0
        %899 = vmatmul.mubr.f32.gmra.mrb[0].mxu0 %v707
        %v900 = vpop.f32.mrb[0].mxu0
        %v901 = vadd.f32 %v762, %v900
        %v902 = vpop.f32.mrb[0].mxu0
        %903 = vmatprep.mubr.f32.mxu0 0.0
        %904 = vmatmul.mubr.f32.gmra.mrb[0].mxu0 %v708
        %v905 = vpop.f32.mrb[0].mxu0
        %v906 = vadd.f32 %v762, %v905
        %v907 = vpop.f32.mrb[0].mxu0
        %908 = vmatprep.mubr.f32.mxu0 0.0
        %909 = vmatmul.mubr.f32.gmra.mrb[0].mxu0 %v709
        %v910 = vpop.f32.mrb[0].mxu0
        %v911 = vadd.f32 %v762, %v910
        %v912 = vpop.f32.mrb[0].mxu0
        %913 = vmatprep.mubr.f32.mxu0 0.0
        %914 = vmatmul.mubr.f32.gmra.mrb[0].mxu0 %v710
        %v915 = vpop.f32.mrb[0].mxu0
        %v916 = vadd.f32 %v762, %v915
        %v917 = vpop.f32.mrb[0].mxu0
        %918 = vmatprep.mubr.f32.mxu0 0.0
        %919 = vmatmul.mubr.f32.gmra.mrb[0].mxu0 %v711
        %v920 = vpop.f32.mrb[0].mxu0
        %v921 = vadd.f32 %v762, %v920
        %v922 = vpop.f32.mrb[0].mxu0
        %923 = vmatprep.mubr.f32.mxu0 0.0
        %924 = vmatmul.mubr.f32.gmra.mrb[0].mxu0 %v712
        %v925 = vpop.f32.mrb[0].mxu0
        %v926 = vadd.f32 %v762, %v925
        %v927 = vpop.f32.mrb[0].mxu0
        %928 = vmatprep.mubr.f32.mxu0 0.0
        %929 = vmatmul.mubr.f32.gmra.mrb[0].mxu0 %v713
        %v930 = vpop.f32.mrb[0].mxu0
        %v931 = vadd.f32 %v762, %v930
        %v932 = vpop.f32.mrb[0].mxu0
        %933 = vmatprep.mubr.f32.mxu0 0.0
        %934 = vmatmul.mubr.f32.gmra.mrb[0].mxu0 %v714
        %v935 = vpop.f32.mrb[0].mxu0
        %v936 = vadd.f32 %v762, %v935
        %v937 = vpop.f32.mrb[0].mxu0
        %938 = vmatprep.mubr.f32.mxu0 0.0
        %939 = vmatmul.mubr.f32.gmra.mrb[0].mxu0 %v715
        %v940 = vpop.f32.mrb[0].mxu0
        %v941 = vadd.f32 %v762, %v940
        %v942 = vpop.f32.mrb[0].mxu0
        %943 = vmatprep.mubr.f32.mxu0 0.0
        %944 = vmatmul.mubr.f32.gmra.mrb[0].mxu0 %v716
        %v945 = vpop.f32.mrb[0].mxu0
        %v946 = vadd.f32 %v762, %v945
        %v947 = vpop.f32.mrb[0].mxu0
        %948 = vmatprep.mubr.f32.mxu0 0.0
        %949 = vmatmul.mubr.f32.gmra.mrb[0].mxu0 %v717
        %v950 = vpop.f32.mrb[0].mxu0
        %v951 = vadd.f32 %v762, %v950
        %v952 = vpop.f32.mrb[0].mxu0
        %953 = vmatprep.mubr.f32.mxu0 0.0
        %954 = vmatmul.mubr.f32.gmra.mrb[0].mxu0 %v718
        %v955 = vpop.f32.mrb[0].mxu0
        %v956 = vadd.f32 %v762, %v955
        %v957 = vpop.f32.mrb[0].mxu0
        %958 = vmatprep.mubr.f32.mxu0 0.0
        %959 = vmatmul.mubr.f32.gmra.mrb[0].mxu0 %v719
        %v960 = vpop.f32.mrb[0].mxu0
        %v961 = vadd.f32 %v762, %v960
        %v962 = vpop.f32.mrb[0].mxu0
        %963 = vmatprep.mubr.f32.mxu0 0.0
        %964 = vmatmul.mubr.f32.gmra.mrb[0].mxu0 %v720
        %v965 = vpop.f32.mrb[0].mxu0
        %v966 = vadd.f32 %v762, %v965
        %v967 = vpop.f32.mrb[0].mxu0
        %968 = vmatprep.mubr.f32.mxu0 0.0
        %969 = vmatmul.mubr.f32.gmra.mrb[0].mxu0 %v721
        %v970 = vpop.f32.mrb[0].mxu0
        %v971 = vadd.f32 %v762, %v970
        %v972 = vpop.f32.mrb[0].mxu0
        %973 = vmatprep.mubr.f32.mxu0 0.0
        %974 = vmatmul.mubr.f32.gmra.mrb[0].mxu0 %v722
        %v975 = vpop.f32.mrb[0].mxu0
        %v976 = vadd.f32 %v762, %v975
        %v977 = vpop.f32.mrb[0].mxu0
        %978 = vmatprep.mubr.f32.mxu0 0.0
        %979 = vmatmul.mubr.f32.gmra.mrb[0].mxu0 %v723
        %v980 = vpop.f32.mrb[0].mxu0
        %v981 = vadd.f32 %v762, %v980
        %v982 = vpop.f32.mrb[0].mxu0
        %983 = vmatprep.mubr.f32.mxu0 0.0
        %984 = vmatmul.mubr.f32.gmra.mrb[0].mxu0 %v724
        %v985 = vpop.f32.mrb[0].mxu0
        %v986 = vadd.f32 %v762, %v985
        %v987 = vpop.f32.mrb[0].mxu0
        %988 = vmatprep.mubr.f32.mxu0 0.0
        %989 = vmatmul.mubr.f32.gmra.mrb[0].mxu0 %v725
        %v990 = vpop.f32.mrb[0].mxu0
        %v991 = vadd.f32 %v762, %v990
        %v992 = vpop.f32.mrb[0].mxu0
        %993 = vmatprep.mubr.f32.mxu0 0.0
        %994 = vmatmul.mubr.f32.gmra.mrb[0].mxu0 %v726
        %v995 = vpop.f32.mrb[0].mxu0
        %v996 = vadd.f32 %v762, %v995
        %v997 = vpop.f32.mrb[0].mxu0
        %998 = vmatprep.mubr.f32.mxu0 0.0
        %999 = vmatmul.mubr.f32.gmra.mrb[0].mxu0 %v727
        %v1000 = vpop.f32.mrb[0].mxu0
        %v1001 = vadd.f32 %v762, %v1000
        %v1002 = vpop.f32.mrb[0].mxu0
        %1003 = vmatprep.mubr.f32.mxu0 0.0
        %1004 = vmatmul.mubr.f32.gmra.mrb[0].mxu0 %v728
        %v1005 = vpop.f32.mrb[0].mxu0
        %v1006 = vadd.f32 %v762, %v1005
        %v1007 = vpop.f32.mrb[0].mxu0
        %1008 = vmatprep.mubr.f32.mxu0 0.0
        %1009 = vmatmul.mubr.f32.gmra.mrb[0].mxu0 %v729
        %v1010 = vpop.f32.mrb[0].mxu0
        %v1011 = vadd.f32 %v762, %v1010
        %v1012 = vpop.f32.mrb[0].mxu0
        %1013 = vmatprep.mubr.f32.mxu0 0.0
        %1014 = vmatmul.mubr.f32.gmra.mrb[0].mxu0 %v730
        %v1015 = vpop.f32.mrb[0].mxu0
        %v1016 = vadd.f32 %v762, %v1015
        %v1017 = vpop.f32.mrb[0].mxu0
        %1018 = vmatprep.mubr.f32.mxu0 0.0
        %1019 = vmatmul.mubr.f32.gmra.mrb[0].mxu0 %v731
        %v1020 = vpop.f32.mrb[0].mxu0
        %v1021 = vadd.f32 %v762, %v1020
        %v1022 = vpop.f32.mrb[0].mxu0
        %1023 = vmatprep.mubr.f32.mxu0 0.0
        %1024 = vmatmul.mubr.f32.gmra.mrb[0].mxu0 %v732
        %v1025 = vpop.f32.mrb[0].mxu0
        %v1026 = vadd.f32 %v762, %v1025
        %v1027 = vpop.f32.mrb[0].mxu0
        %1028 = vmatprep.mubr.f32.mxu0 0.0
        %1029 = vmatmul.mubr.f32.gmra.mrb[0].mxu0 %v733
        %v1030 = vpop.f32.mrb[0].mxu0
        %v1031 = vadd.f32 %v762, %v1030
        %v1032 = vpop.f32.mrb[0].mxu0
        %1033 = vmatprep.mubr.f32.mxu0 0.0
        %1034 = vmatmul.mubr.f32.gmra.mrb[0].mxu0 %v734
        %v1035 = vpop.f32.mrb[0].mxu0
        %v1036 = vadd.f32 %v762, %v1035
        %v1037 = vpop.f32.mrb[0].mxu0
        %1038 = vmatprep.mubr.f32.mxu0 0.0
        %1039 = vmatmul.mubr.f32.gmra.mrb[0].mxu0 %v735
        %v1040 = vpop.f32.mrb[0].mxu0
        %v1041 = vadd.f32 %v762, %v1040
        %v1042 = vpop.f32.mrb[0].mxu0
        %1043 = vmatprep.mubr.f32.mxu0 0.0
        %1044 = vmatmul.mubr.f32.gmra.mrb[0].mxu0 %v736
        %v1045 = vpop.f32.mrb[0].mxu0
        %v1046 = vadd.f32 %v762, %v1045
        %v1047 = vpop.f32.mrb[0].mxu0
        %1048 = vmatprep.mubr.f32.mxu0 0.0
        %1049 = vmatmul.mubr.f32.gmra.mrb[0].mxu0 %v737
        %v1050 = vpop.f32.mrb[0].mxu0
        %v1051 = vadd.f32 %v762, %v1050
        %v1052 = vpop.f32.mrb[0].mxu0
        %1053 = vmatprep.mubr.f32.mxu0 0.0
        %1054 = vmatmul.mubr.f32.gmra.mrb[0].mxu0 %v738
        %v1055 = vpop.f32.mrb[0].mxu0
        %v1056 = vadd.f32 %v762, %v1055
        %v1057 = vpop.f32.mrb[0].mxu0
        %1058 = vmatprep.mubr.f32.mxu0 0.0
        %1059 = vmatmul.mubr.f32.gmra.mrb[0].mxu0 %v739
        %v1060 = vpop.f32.mrb[0].mxu0
        %v1061 = vadd.f32 %v762, %v1060
        %v1062 = vpop.f32.mrb[0].mxu0
        %1063 = vmatprep.mubr.f32.mxu0 0.0
        %1064 = vmatmul.mubr.f32.gmra.mrb[0].mxu0 %v740
        %v1065 = vpop.f32.mrb[0].mxu0
        %v1066 = vadd.f32 %v762, %v1065
        %v1067 = vpop.f32.mrb[0].mxu0
        %1068 = vdwg.mxu0
        %v1069 = vtanh.pop %v831
        %v1070 = vtanh.pop %v836
        %v1071 = vtanh.pop %v841
        %v1072 = vtanh.pop %v846
        %v1073 = vtanh.pop %v851
        %v1074 = vtanh.pop %v856
        %v1075 = vtanh.pop %v861
        %v1076 = vtanh.pop %v866
        %v1077 = vtanh.pop %v871
        %v1078 = vtanh.pop %v876
        %v1079 = vtanh.pop %v881
        %v1080 = vtanh.pop %v886
        %v1081 = vtanh.pop %v891
        %v1082 = vtanh.pop %v896
        %v1083 = vtanh.pop %v901
        %v1084 = vtanh.pop %v906
        %v1085 = vtanh.pop %v911
        %v1086 = vtanh.pop %v916
        %v1087 = vtanh.pop %v921
        %v1088 = vtanh.pop %v926
        %v1089 = vtanh.pop %v931
        %v1090 = vtanh.pop %v936
        %v1091 = vtanh.pop %v941
        %v1092 = vtanh.pop %v946
        %v1093 = vtanh.pop %v951
        %v1094 = vtanh.pop %v956
        %v1095 = vtanh.pop %v961
        %v1096 = vtanh.pop %v966
        %v1097 = vtanh.pop %v971
        %v1098 = vtanh.pop %v976
        %v1099 = vtanh.pop %v981
        %v1100 = vtanh.pop %v986
        %v1101 = vtanh.pop %v991
        %v1102 = vtanh.pop %v996
        %v1103 = vtanh.pop %v1001
        %v1104 = vtanh.pop %v1006
        %v1105 = vtanh.pop %v1011
        %v1106 = vtanh.pop %v1016
        %v1107 = vtanh.pop %v1021
        %v1108 = vtanh.pop %v1026
        %v1109 = vtanh.pop %v1031
        %v1110 = vtanh.pop %v1036
        %v1111 = vtanh.pop %v1041
        %v1112 = vtanh.pop %v1046
        %v1113 = vtanh.pop %v1051
        %v1114 = vtanh.pop %v1056
        %v1115 = vtanh.pop %v1061
        %v1116 = vtanh.pop %v1066
        %v1117 = vld [vmem:[%s9] sm:$0xff]
        %v1118 = vld [vmem:[%s9 + $0x8] sm:$0xff]
        %v1119 = vld [vmem:[%s9 + $0x10] sm:$0xff]
        %v1120 = vld [vmem:[%s9 + $0x18] sm:$0xff]
        %v1121 = vld [vmem:[%s9 + $0x20] sm:$0xff]
        %v1122 = vld [vmem:[%s9 + $0x28] sm:$0xff]
        %v1123 = vld [vmem:[%s9 + $0x30] sm:$0xff]
        %v1124 = vld [vmem:[%s9 + $0x38] sm:$0xff]
        %v1125 = vld [vmem:[%s9 + $0x40] sm:$0xff]
        %v1126 = vld [vmem:[%s9 + $0x48] sm:$0xff]
        %v1127 = vld [vmem:[%s9 + $0x50] sm:$0xff]
        %v1128 = vld [vmem:[%s9 + $0x58] sm:$0xff]
        %v1129 = vld [vmem:[%s9 + $0x60] sm:$0xff]
        %v1130 = vld [vmem:[%s9 + $0x68] sm:$0xff]
        %v1131 = vld [vmem:[%s9 + $0x70] sm:$0xff]
        %v1132 = vld [vmem:[%s9 + $0x78] sm:$0xff]
        %v1133 = vld [vmem:[%s9 + $0x80] sm:$0xff]
        %v1134 = vld [vmem:[%s9 + $0x88] sm:$0xff]
        %1135 = vmatprep.subr.mxu0 0.0
        %1136 = vmatpush1.msra.mxu0 %v1069
        %1137 = vmatprep.subr.mxu0 0.0
        %1138 = vmatpush1.msra.mxu0 %v1070
        %1139 = vmatprep.subr.mxu0 0.0
        %1140 = vmatpush1.msra.mxu0 %v1071
        %1141 = vmatprep.subr.mxu0 0.0
        %1142 = vmatpush1.msra.mxu0 %v1072
        %1143 = vmatprep.subr.mxu0 0.0
        %1144 = vmatpush1.msra.mxu0 %v1073
        %1145 = vmatprep.subr.mxu0 0.0
        %1146 = vmatpush1.msra.mxu0 %v1074
        %1147 = vmatprep.subr.mxu0 0.0
        %1148 = vmatpush1.msra.mxu0 %v1075
        %1149 = vmatprep.subr.mxu0 0.0
        %1150 = vmatpush1.msra.mxu0 %v1076
        %1151 = vmatprep.subr.mxu0 0.0
        %1152 = vmatpush1.msra.mxu0 %v1077
        %1153 = vmatprep.subr.mxu0 0.0
        %1154 = vmatpush1.msra.mxu0 %v1078
        %1155 = vmatprep.subr.mxu0 0.0
        %1156 = vmatpush1.msra.mxu0 %v1079
        %1157 = vmatprep.subr.mxu0 0.0
        %1158 = vmatpush1.msra.mxu0 %v1080
        %1159 = vmatprep.subr.mxu0 0.0
        %1160 = vmatpush1.msra.mxu0 %v1081
        %1161 = vmatprep.subr.mxu0 0.0
        %1162 = vmatpush1.msra.mxu0 %v1082
        %1163 = vmatprep.subr.mxu0 0.0
        %1164 = vmatpush1.msra.mxu0 %v1083
        %1165 = vmatprep.subr.mxu0 0.0
        %1166 = vmatpush1.msra.mxu0 %v1084
        %1167 = vmatprep.subr.mxu0 0.0
        %1168 = vmatpush1.msra.mxu0 %v1085
        %1169 = vmatprep.subr.mxu0 0.0
        %1170 = vmatpush1.msra.mxu0 %v1086
        %1171 = vmatprep.subr.mxu0 0.0
        %1172 = vmatpush1.msra.mxu0 %v1087
        %1173 = vmatprep.subr.mxu0 0.0
        %1174 = vmatpush1.msra.mxu0 %v1088
        %1175 = vmatprep.subr.mxu0 0.0
        %1176 = vmatpush1.msra.mxu0 %v1089
        %1177 = vmatprep.subr.mxu0 0.0
        %1178 = vmatpush1.msra.mxu0 %v1090
        %1179 = vmatprep.subr.mxu0 0.0
        %1180 = vmatpush1.msra.mxu0 %v1091
        %1181 = vmatprep.subr.mxu0 0.0
        %1182 = vmatpush1.msra.mxu0 %v1092
        %1183 = vmatprep.subr.mxu0 0.0
        %1184 = vmatpush1.msra.mxu0 %v1093
        %1185 = vmatprep.subr.mxu0 0.0
        %1186 = vmatpush1.msra.mxu0 %v1094
        %1187 = vmatprep.subr.mxu0 0.0
        %1188 = vmatpush1.msra.mxu0 %v1095
        %1189 = vmatprep.subr.mxu0 0.0
        %1190 = vmatpush1.msra.mxu0 %v1096
        %1191 = vmatprep.subr.mxu0 0.0
        %1192 = vmatpush1.msra.mxu0 %v1097
        %1193 = vmatprep.subr.mxu0 0.0
        %1194 = vmatpush1.msra.mxu0 %v1098
        %1195 = vmatprep.subr.mxu0 0.0
        %1196 = vmatpush1.msra.mxu0 %v1099
        %1197 = vmatprep.subr.mxu0 0.0
        %1198 = vmatpush1.msra.mxu0 %v1100
        %1199 = vmatprep.mubr.f32.mxu0 %v1118
        %1200 = vmatmul.mubr.f32.gmra.mrb[0].mxu0 %v1117
        %v1201 = vpop.f32.mrb[0].mxu0
        %v1202 = vadd.f32 0.0, %v1201
        %v1203 = vpop.f32.mrb[0].mxu0
        %1204 = vmatprep.mubr.f32.mxu0 %v1121
        %1205 = vmatmul.mubr.f32.gmra.mrb[0].mxu0 %v1120
        %v1206 = vpop.f32.mrb[0].mxu0
        %v1207 = vadd.f32 0.0, %v1206
        %v1208 = vpop.f32.mrb[0].mxu0
        %1209 = vmatprep.mubr.f32.mxu0 %v1124
        %1210 = vmatmul.mubr.f32.gmra.mrb[0].mxu0 %v1123
        %v1211 = vpop.f32.mrb[0].mxu0
        %v1212 = vadd.f32 0.0, %v1211
        %v1213 = vpop.f32.mrb[0].mxu0
        %1214 = vmatprep.mubr.f32.mxu0 %v1127
        %1215 = vmatmul.mubr.f32.gmra.mrb[0].mxu0 %v1126
        %v1216 = vpop.f32.mrb[0].mxu0
        %v1217 = vadd.f32 0.0, %v1216
        %v1218 = vpop.f32.mrb[0].mxu0
        %1219 = vmatprep.mubr.f32.mxu0 %v1130
        %1220 = vmatmul.mubr.f32.gmra.mrb[0].mxu0 %v1129
        %v1221 = vpop.f32.mrb[0].mxu0
        %v1222 = vadd.f32 0.0, %v1221
        %v1223 = vpop.f32.mrb[0].mxu0
        %1224 = vmatprep.mubr.f32.mxu0 %v1133
        %1225 = vmatmul.mubr.f32.gmra.mrb[0].mxu0 %v1132
        %v1226 = vpop.f32.mrb[0].mxu0
        %v1227 = vadd.f32 0.0, %v1226
        %v1228 = vpop.f32.mrb[0].mxu0
        %1229 = vdwg.mxu0
        %1230 = vmatprep.subr.mxu0 0.0
        %1231 = vmatpush1.msra.mxu0 %v1101
        %1232 = vmatprep.subr.mxu0 0.0
        %1233 = vmatpush1.msra.mxu0 %v1102
        %1234 = vmatprep.subr.mxu0 0.0
        %1235 = vmatpush1.msra.mxu0 %v1103
        %1236 = vmatprep.subr.mxu0 0.0
        %1237 = vmatpush1.msra.mxu0 %v1104
        %1238 = vmatprep.subr.mxu0 0.0
        %1239 = vmatpush1.msra.mxu0 %v1105
        %1240 = vmatprep.subr.mxu0 0.0
        %1241 = vmatpush1.msra.mxu0 %v1106
        %1242 = vmatprep.subr.mxu0 0.0
        %1243 = vmatpush1.msra.mxu0 %v1107
        %1244 = vmatprep.subr.mxu0 0.0
        %1245 = vmatpush1.msra.mxu0 %v1108
        %1246 = vmatprep.subr.mxu0 0.0
        %1247 = vmatpush1.msra.mxu0 %v1109
        %1248 = vmatprep.subr.mxu0 0.0
        %1249 = vmatpush1.msra.mxu0 %v1110
        %1250 = vmatprep.subr.mxu0 0.0
        %1251 = vmatpush1.msra.mxu0 %v1111
        %1252 = vmatprep.subr.mxu0 0.0
        %1253 = vmatpush1.msra.mxu0 %v1112
        %1254 = vmatprep.subr.mxu0 0.0
        %1255 = vmatpush1.msra.mxu0 %v1113
        %1256 = vmatprep.subr.mxu0 0.0
        %1257 = vmatpush1.msra.mxu0 %v1114
        %1258 = vmatprep.subr.mxu0 0.0
        %1259 = vmatpush1.msra.mxu0 %v1115
        %1260 = vmatprep.subr.mxu0 0.0
        %1261 = vmatpush1.msra.mxu0 %v1116
        %1262 = vmatprep.subr.mxu0 0.0
        %1263 = vmatpush1.msra.mxu0 0.0
        %1264 = vmatprep.subr.mxu0 0.0
        %1265 = vmatpush1.msra.mxu0 0.0
        %1266 = vmatprep.subr.mxu0 0.0
        %1267 = vmatpush1.msra.mxu0 0.0
        %1268 = vmatprep.subr.mxu0 0.0
        %1269 = vmatpush1.msra.mxu0 0.0
        %1270 = vmatprep.subr.mxu0 0.0
        %1271 = vmatpush1.msra.mxu0 0.0
        %1272 = vmatprep.subr.mxu0 0.0
        %1273 = vmatpush1.msra.mxu0 0.0
        %1274 = vmatprep.subr.mxu0 0.0
        %1275 = vmatpush1.msra.mxu0 0.0
        %1276 = vmatprep.subr.mxu0 0.0
        %1277 = vmatpush1.msra.mxu0 0.0
        %1278 = vmatprep.subr.mxu0 0.0
        %1279 = vmatpush1.msra.mxu0 0.0
        %1280 = vmatprep.subr.mxu0 0.0
        %1281 = vmatpush1.msra.mxu0 0.0
        %1282 = vmatprep.subr.mxu0 0.0
        %1283 = vmatpush1.msra.mxu0 0.0
        %1284 = vmatprep.subr.mxu0 0.0
        %1285 = vmatpush1.msra.mxu0 0.0
        %1286 = vmatprep.subr.mxu0 0.0
        %1287 = vmatpush1.msra.mxu0 0.0
        %1288 = vmatprep.subr.mxu0 0.0
        %1289 = vmatpush1.msra.mxu0 0.0
        %1290 = vmatprep.subr.mxu0 0.0
        %1291 = vmatpush1.msra.mxu0 0.0
        %1292 = vmatprep.subr.mxu0 0.0
        %1293 = vmatpush1.msra.mxu0 0.0
        %1294 = vmatprep.mubr.f32.mxu0 0.0
        %1295 = vmatmul.mubr.f32.gmra.mrb[0].mxu0 %v1119
        %v1296 = vpop.f32.mrb[0].mxu0
        %v1297 = vadd.f32 %v1202, %v1296
        %v1298 = vpop.f32.mrb[0].mxu0
        %1299 = vmatprep.mubr.f32.mxu0 0.0
        %1300 = vmatmul.mubr.f32.gmra.mrb[0].mxu0 %v1122
        %v1301 = vpop.f32.mrb[0].mxu0
        %v1302 = vadd.f32 %v1207, %v1301
        %v1303 = vpop.f32.mrb[0].mxu0
        %1304 = vmatprep.mubr.f32.mxu0 0.0
        %1305 = vmatmul.mubr.f32.gmra.mrb[0].mxu0 %v1125
        %v1306 = vpop.f32.mrb[0].mxu0
        %v1307 = vadd.f32 %v1212, %v1306
        %v1308 = vpop.f32.mrb[0].mxu0
        %1309 = vmatprep.mubr.f32.mxu0 0.0
        %1310 = vmatmul.mubr.f32.gmra.mrb[0].mxu0 %v1128
        %v1311 = vpop.f32.mrb[0].mxu0
        %v1312 = vadd.f32 %v1217, %v1311
        %v1313 = vpop.f32.mrb[0].mxu0
        %1314 = vmatprep.mubr.f32.mxu0 0.0
        %1315 = vmatmul.mubr.f32.gmra.mrb[0].mxu0 %v1131
        %v1316 = vpop.f32.mrb[0].mxu0
        %v1317 = vadd.f32 %v1222, %v1316
        %v1318 = vpop.f32.mrb[0].mxu0
        %1319 = vmatprep.mubr.f32.mxu0 0.0
        %1320 = vmatmul.mubr.f32.gmra.mrb[0].mxu0 %v1134
        %v1321 = vpop.f32.mrb[0].mxu0
        %v1322 = vadd.f32 %v1227, %v1321
        %v1323 = vpop.f32.mrb[0].mxu0
        %1324 = vdwg.mxu0
        %v1325 = vmul.f32 %v690, %v690
        %1326 = vadd.xlane.f32.xlu0 %v1325
        %v1327 = vpop.xlane.xlu0 %1326
        %v1328 = vrsqrt.pop %v1327
        %v1329 = vmul.f32 %v1327, %v1328
        %vm1330 = vcmp.eq.f32.partialorder %v1327, inf
        %v1331 = vsel %vm1330, %v1327, %v1329
        %vm1332 = vcmp.eq.f32.partialorder %v1327, 0.0
        %v1333 = vand.u32 %v1327, 2147483648
        %v1334 = vsel %vm1332, %v1333, %v1331
        %v1335 = vmax.f32 %v1334, 1e-08
        %v1336 = vrcp.pop %v1335
        %v1337 = vmul.f32 %v690, %v1336
        %v1338 = vmul.f32 %v1297, %v1297
        %v1339 = vmul.f32 %v1302, %v1302
        %v1340 = vmul.f32 %v1307, %v1307
        %v1341 = vmul.f32 %v1312, %v1312
        %v1342 = vmul.f32 %v1317, %v1317
        %v1343 = vmul.f32 %v1322, %v1322
        %1344 = vadd.xlane.f32.xlu0 %v1338
        %v1345 = vpop.xlane.xlu0 %1344
        %1346 = vadd.xlane.f32.xlu0 %v1339
        %v1347 = vpop.xlane.xlu0 %1346
        %1348 = vadd.xlane.f32.xlu0 %v1340
        %v1349 = vpop.xlane.xlu0 %1348
        %1350 = vadd.xlane.f32.xlu0 %v1341
        %v1351 = vpop.xlane.xlu0 %1350
        %1352 = vadd.xlane.f32.xlu0 %v1342
        %v1353 = vpop.xlane.xlu0 %1352
        %1354 = vadd.xlane.f32.xlu0 %v1343
        %v1355 = vpop.xlane.xlu0 %1354
        %v1356 = vrsqrt.pop %v1345
        %v1357 = vmul.f32 %v1345, %v1356
        %vm1358 = vcmp.eq.f32.partialorder %v1345, inf
        %v1359 = vsel %vm1358, %v1345, %v1357
        %vm1360 = vcmp.eq.f32.partialorder %v1345, 0.0
        %v1361 = vand.u32 %v1345, 2147483648
        %v1362 = vsel %vm1360, %v1361, %v1359
        %v1363 = vrsqrt.pop %v1347
        %v1364 = vmul.f32 %v1347, %v1363
        %vm1365 = vcmp.eq.f32.partialorder %v1347, inf
        %v1366 = vsel %vm1365, %v1347, %v1364
        %vm1367 = vcmp.eq.f32.partialorder %v1347, 0.0
        %v1368 = vand.u32 %v1347, 2147483648
        %v1369 = vsel %vm1367, %v1368, %v1366
        %v1370 = vrsqrt.pop %v1349
        %v1371 = vmul.f32 %v1349, %v1370
        %vm1372 = vcmp.eq.f32.partialorder %v1349, inf
        %v1373 = vsel %vm1372, %v1349, %v1371
        %vm1374 = vcmp.eq.f32.partialorder %v1349, 0.0
        %v1375 = vand.u32 %v1349, 2147483648
        %v1376 = vsel %vm1374, %v1375, %v1373
        %v1377 = vrsqrt.pop %v1351
        %v1378 = vmul.f32 %v1351, %v1377
        %vm1379 = vcmp.eq.f32.partialorder %v1351, inf
        %v1380 = vsel %vm1379, %v1351, %v1378
        %vm1381 = vcmp.eq.f32.partialorder %v1351, 0.0
        %v1382 = vand.u32 %v1351, 2147483648
        %v1383 = vsel %vm1381, %v1382, %v1380
        %v1384 = vrsqrt.pop %v1353
        %v1385 = vmul.f32 %v1353, %v1384
        %vm1386 = vcmp.eq.f32.partialorder %v1353, inf
        %v1387 = vsel %vm1386, %v1353, %v1385
        %vm1388 = vcmp.eq.f32.partialorder %v1353, 0.0
        %v1389 = vand.u32 %v1353, 2147483648
        %v1390 = vsel %vm1388, %v1389, %v1387
        %v1391 = vrsqrt.pop %v1355
        %v1392 = vmul.f32 %v1355, %v1391
        %vm1393 = vcmp.eq.f32.partialorder %v1355, inf
        %v1394 = vsel %vm1393, %v1355, %v1392
        %vm1395 = vcmp.eq.f32.partialorder %v1355, 0.0
        %v1396 = vand.u32 %v1355, 2147483648
        %v1397 = vsel %vm1395, %v1396, %v1394
        %v1398 = vmax.f32 %v1362, 1e-08
        %v1399 = vmax.f32 %v1369, 1e-08
        %v1400 = vmax.f32 %v1376, 1e-08
        %v1401 = vmax.f32 %v1383, 1e-08
        %v1402 = vmax.f32 %v1390, 1e-08
        %v1403 = vmax.f32 %v1397, 1e-08
        %v1404 = vrcp.pop %v1398
        %v1405 = vmul.f32 %v1297, %v1404
        %v1406 = vrcp.pop %v1399
        %v1407 = vmul.f32 %v1302, %v1406
        %v1408 = vrcp.pop %v1400
        %v1409 = vmul.f32 %v1307, %v1408
        %v1410 = vrcp.pop %v1401
        %v1411 = vmul.f32 %v1312, %v1410
        %v1412 = vrcp.pop %v1402
        %v1413 = vmul.f32 %v1317, %v1412
        %v1414 = vrcp.pop %v1403
        %v1415 = vmul.f32 %v1322, %v1414
        %1416 = vmatprep.subr.mxu0 0.0
        %1417 = vmatpush1.xpose.msra.mxu0 %v1405
        %1418 = vmatprep.subr.mxu0 0.0
        %1419 = vmatpush1.xpose.msra.mxu0 %v1407
        %1420 = vmatprep.subr.mxu0 0.0
        %1421 = vmatpush1.xpose.msra.mxu0 %v1409
        %1422 = vmatprep.subr.mxu0 0.0
        %1423 = vmatpush1.xpose.msra.mxu0 %v1411
        %1424 = vmatprep.subr.mxu0 0.0
        %1425 = vmatpush1.xpose.msra.mxu0 %v1413
        %1426 = vmatprep.subr.mxu0 0.0
        %1427 = vmatpush1.xpose.msra.mxu0 %v1415
        %1428 = vmatprep.subr.mxu0 0.0
        %1429 = vmatpush1.xpose.msra.mxu0 0.0
        %1430 = vmatprep.subr.mxu0 0.0
        %1431 = vmatpush1.xpose.msra.mxu0 0.0
        %1432 = vmatprep.subr.mxu0 0.0
        %1433 = vmatpush1.xpose.msra.mxu0 0.0
        %1434 = vmatprep.subr.mxu0 0.0
        %1435 = vmatpush1.xpose.msra.mxu0 0.0
        %1436 = vmatprep.subr.mxu0 0.0
        %1437 = vmatpush1.xpose.msra.mxu0 0.0
        %1438 = vmatprep.subr.mxu0 0.0
        %1439 = vmatpush1.xpose.msra.mxu0 0.0
        %1440 = vmatprep.subr.mxu0 0.0
        %1441 = vmatpush1.xpose.msra.mxu0 0.0
        %1442 = vmatprep.subr.mxu0 0.0
        %1443 = vmatpush1.xpose.msra.mxu0 0.0
        %1444 = vmatprep.subr.mxu0 0.0
        %1445 = vmatpush1.xpose.msra.mxu0 0.0
        %1446 = vmatprep.subr.mxu0 0.0
        %1447 = vmatpush1.xpose.msra.mxu0 0.0
        %1448 = vmatprep.subr.mxu0 0.0
        %1449 = vmatpush1.xpose.msra.mxu0 0.0
        %1450 = vmatprep.subr.mxu0 0.0
        %1451 = vmatpush1.xpose.msra.mxu0 0.0
        %1452 = vmatprep.subr.mxu0 0.0
        %1453 = vmatpush1.xpose.msra.mxu0 0.0
        %1454 = vmatprep.subr.mxu0 0.0
        %1455 = vmatpush1.xpose.msra.mxu0 0.0
        %1456 = vmatprep.subr.mxu0 0.0
        %1457 = vmatpush1.xpose.msra.mxu0 0.0
        %1458 = vmatprep.subr.mxu0 0.0
        %1459 = vmatpush1.xpose.msra.mxu0 0.0
        %1460 = vmatprep.subr.mxu0 0.0
        %1461 = vmatpush1.xpose.msra.mxu0 0.0
        %1462 = vmatprep.subr.mxu0 0.0
        %1463 = vmatpush1.xpose.msra.mxu0 0.0
        %1464 = vmatprep.subr.mxu0 0.0
        %1465 = vmatpush1.xpose.msra.mxu0 0.0
        %1466 = vmatprep.subr.mxu0 0.0
        %1467 = vmatpush1.xpose.msra.mxu0 0.0
        %1468 = vmatprep.subr.mxu0 0.0
        %1469 = vmatpush1.xpose.msra.mxu0 0.0
        %1470 = vmatprep.subr.mxu0 0.0
        %1471 = vmatpush1.xpose.msra.mxu0 0.0
        %1472 = vmatprep.subr.mxu0 0.0
        %1473 = vmatpush1.xpose.msra.mxu0 0.0
        %1474 = vmatprep.subr.mxu0 0.0
        %1475 = vmatpush1.xpose.msra.mxu0 0.0
        %1476 = vmatprep.subr.mxu0 0.0
        %1477 = vmatpush1.xpose.msra.mxu0 0.0
        %1478 = vmatprep.subr.mxu0 0.0
        %1479 = vmatpush1.xpose.msra.mxu0 0.0
        %1480 = vmatprep.mubr.f32.mxu0 0.0
        %1481 = vmatmul.mubr.f32.gmra.mrb[0].mxu0 %v1337
        %v1482 = vpop.f32.mrb[0].mxu0
        %v1483 = vadd.f32 0.0, %v1482
        %v1484 = vpop.f32.mrb[0].mxu0
        %1485 = vdwg.mxu0
        %v1486 = vld [vmem:[%s10] sm:$0xff]
        %v1487 = vmul.f32 %v1483, %v1486
        %v1488 = vld [vmem:[%s11] sm:$0xff]
        %v1489 = vld [vmem:[%s11 + $0x8] sm:$0xff]
        %v1490 = vld [vmem:[%s11 + $0x10] sm:$0xff]
        %v1491 = vld [vmem:[%s11 + $0x18] sm:$0xff]
        %v1492 = vld [vmem:[%s11 + $0x20] sm:$0xff]
        %v1493 = vld [vmem:[%s11 + $0x28] sm:$0xff]
        %vm1494 = vcmask 392192
        %v1496 = vsel %vm1494, %v1487, 0
        %1498 = vmatprep.subr.mxu0 0.0
        %1499 = vmatpush1.msra.mxu0 %v1488
        %1500 = vmatprep.subr.mxu0 0.0
        %1501 = vmatpush1.msra.mxu0 %v1489
        %1502 = vmatprep.subr.mxu0 0.0
        %1503 = vmatpush1.msra.mxu0 %v1490
        %1504 = vmatprep.subr.mxu0 0.0
        %1505 = vmatpush1.msra.mxu0 %v1491
        %1506 = vmatprep.subr.mxu0 0.0
        %1507 = vmatpush1.msra.mxu0 %v1492
        %1508 = vmatprep.subr.mxu0 0.0
        %1509 = vmatpush1.msra.mxu0 %v1493
        %1510 = vmatprep.subr.mxu0 0.0
        %1511 = vmatpush1.msra.mxu0 0.0
        %1512 = vmatprep.subr.mxu0 0.0
        %1513 = vmatpush1.msra.mxu0 0.0
        %1514 = vmatprep.subr.mxu0 0.0
        %1515 = vmatpush1.msra.mxu0 0.0
        %1516 = vmatprep.subr.mxu0 0.0
        %1517 = vmatpush1.msra.mxu0 0.0
        %1518 = vmatprep.subr.mxu0 0.0
        %1519 = vmatpush1.msra.mxu0 0.0
        %1520 = vmatprep.subr.mxu0 0.0
        %1521 = vmatpush1.msra.mxu0 0.0
        %1522 = vmatprep.subr.mxu0 0.0
        %1523 = vmatpush1.msra.mxu0 0.0
        %1524 = vmatprep.subr.mxu0 0.0
        %1525 = vmatpush1.msra.mxu0 0.0
        %1526 = vmatprep.subr.mxu0 0.0
        %1527 = vmatpush1.msra.mxu0 0.0
        %1528 = vmatprep.subr.mxu0 0.0
        %1529 = vmatpush1.msra.mxu0 0.0
        %1530 = vmatprep.subr.mxu0 0.0
        %1531 = vmatpush1.msra.mxu0 0.0
        %1532 = vmatprep.subr.mxu0 0.0
        %1533 = vmatpush1.msra.mxu0 0.0
        %1534 = vmatprep.subr.mxu0 0.0
        %1535 = vmatpush1.msra.mxu0 0.0
        %1536 = vmatprep.subr.mxu0 0.0
        %1537 = vmatpush1.msra.mxu0 0.0
        %1538 = vmatprep.subr.mxu0 0.0
        %1539 = vmatpush1.msra.mxu0 0.0
        %1540 = vmatprep.subr.mxu0 0.0
        %1541 = vmatpush1.msra.mxu0 0.0
        %1542 = vmatprep.subr.mxu0 0.0
        %1543 = vmatpush1.msra.mxu0 0.0
        %1544 = vmatprep.subr.mxu0 0.0
        %1545 = vmatpush1.msra.mxu0 0.0
        %1546 = vmatprep.subr.mxu0 0.0
        %1547 = vmatpush1.msra.mxu0 0.0
        %1548 = vmatprep.subr.mxu0 0.0
        %1549 = vmatpush1.msra.mxu0 0.0
        %1550 = vmatprep.subr.mxu0 0.0
        %1551 = vmatpush1.msra.mxu0 0.0
        %1552 = vmatprep.subr.mxu0 0.0
        %1553 = vmatpush1.msra.mxu0 0.0
        %1554 = vmatprep.subr.mxu0 0.0
        %1555 = vmatpush1.msra.mxu0 0.0
        %1556 = vmatprep.subr.mxu0 0.0
        %1557 = vmatpush1.msra.mxu0 0.0
        %1558 = vmatprep.subr.mxu0 0.0
        %1559 = vmatpush1.msra.mxu0 0.0
        %1560 = vmatprep.subr.mxu0 0.0
        %1561 = vmatpush1.msra.mxu0 0.0
        %1562 = vmatprep.mubr.f32.mxu0 0.0
        %1563 = vmatmul.mubr.f32.gmra.mrb[0].mxu0 %v1496
        %v1564 = vpop.f32.mrb[0].mxu0
        %v1565 = vadd.f32 0.0, %v1564
        %v1566 = vpop.f32.mrb[0].mxu0
        %1567 = vdwg.mxu0
        %1568 = vst [vmem:[%s473] sm:$0xff] %v1565
        %vm1569 = vcmp.gt.f32.partialorder %v1486, 0.0
        %v1570 = vsel %vm1569, %v1483, -inf
        %v1571 = vsel %vm1494, %v1570, -inf
        %1572 = vmax.xlane.f32.xlu0 %v1571
        %v1573 = vpop.xlane.xlu0 %1572
        %v1574 = vlaneseq
        %v1575 = vand.u32 %v1574, 127
        %vm1576 = vcmp.ge.f32.partialorder %v1570, %v1573
        %v1577 = vsel %vm1576, %v1575, 48
        %v1578 = vsel %vm1494, %v1577, 2147483647
        %v1579 = vand.u32 %v1578, 65535
        %v1580 = vshra.s32 %v1578, 16
        %v1581 = vcvt.s32.f32 %v1579
        %v1582 = vcvt.s32.f32 %v1580
        %1583 = vmin.xlane.f32.xlu0 %v1582
        %v1584 = vpop.xlane.xlu0 %1583
        %vm1585 = vcmp.eq.f32.partialorder %v1582, %v1584
        %v1586 = vsel %vm1585, %v1581, inf
        %1587 = vmin.xlane.f32.xlu0 %v1586
        %v1588 = vpop.xlane.xlu0 %1587
        %v1589 = vcvt.f32.s32 %v1588
        %v1590 = vcvt.f32.s32 %v1584
        %v1591 = vshll.u32 %v1590, 16
        %v1592 = vadd.s32 %v1591, %v1589
        %vm1593 = vcmp.ne.s32.totalorder %v1575, %v1592
        %vm1594 = vmand %vm1569, %vm1593
        %v1595 = vsel %vm1594, 0.2, 0.0
        %v1596 = vld [vmem:[%s6] sm:$0xff]
        %v1597 = vld [vmem:[%s6 + $0x8] sm:$0xff]
        %v1598 = vld [vmem:[%s6 + $0x10] sm:$0xff]
        %v1599 = vld [vmem:[%s6 + $0x18] sm:$0xff]
        %v1600 = vld [vmem:[%s6 + $0x20] sm:$0xff]
        %v1601 = vld [vmem:[%s6 + $0x28] sm:$0xff]
        %v1602 = vld [vmem:[%s6 + $0x30] sm:$0xff]
        %v1603 = vld [vmem:[%s6 + $0x38] sm:$0xff]
        %v1604 = vld [vmem:[%s6 + $0x40] sm:$0xff]
        %v1605 = vld [vmem:[%s6 + $0x48] sm:$0xff]
        %v1606 = vld [vmem:[%s6 + $0x50] sm:$0xff]
        %v1607 = vld [vmem:[%s6 + $0x58] sm:$0xff]
        %v1608 = vld [vmem:[%s6 + $0x60] sm:$0xff]
        %v1609 = vld [vmem:[%s6 + $0x68] sm:$0xff]
        %v1610 = vld [vmem:[%s6 + $0x70] sm:$0xff]
        %v1611 = vld [vmem:[%s6 + $0x78] sm:$0xff]
        %v1612 = vld [vmem:[%s7] sm:$0x1]
        %v1614 = vlaneseq
        %v1615 = vshrl.u32 %v1614, 7
        %v1616 = vsub.s32 0, %v1615
        %v1617 = vrot.slane %v1612, %v1616
        %1619 = vmatprep.subr.mxu0 0.0
        %1620 = vmatpush1.msra.mxu0 %v1596
        %1621 = vmatprep.subr.mxu0 0.0
        %1622 = vmatpush1.msra.mxu0 %v1597
        %1623 = vmatprep.subr.mxu0 0.0
        %1624 = vmatpush1.msra.mxu0 %v1598
        %1625 = vmatprep.subr.mxu0 0.0
        %1626 = vmatpush1.msra.mxu0 %v1599
        %1627 = vmatprep.subr.mxu0 0.0
        %1628 = vmatpush1.msra.mxu0 %v1600
        %1629 = vmatprep.subr.mxu0 0.0
        %1630 = vmatpush1.msra.mxu0 %v1601
        %1631 = vmatprep.subr.mxu0 0.0
        %1632 = vmatpush1.msra.mxu0 %v1602
        %1633 = vmatprep.subr.mxu0 0.0
        %1634 = vmatpush1.msra.mxu0 %v1603
        %1635 = vmatprep.subr.mxu0 0.0
        %1636 = vmatpush1.msra.mxu0 %v1604
        %1637 = vmatprep.subr.mxu0 0.0
        %1638 = vmatpush1.msra.mxu0 %v1605
        %1639 = vmatprep.subr.mxu0 0.0
        %1640 = vmatpush1.msra.mxu0 %v1606
        %1641 = vmatprep.subr.mxu0 0.0
        %1642 = vmatpush1.msra.mxu0 %v1607
        %1643 = vmatprep.subr.mxu0 0.0
        %1644 = vmatpush1.msra.mxu0 %v1608
        %1645 = vmatprep.subr.mxu0 0.0
        %1646 = vmatpush1.msra.mxu0 %v1609
        %1647 = vmatprep.subr.mxu0 0.0
        %1648 = vmatpush1.msra.mxu0 %v1610
        %1649 = vmatprep.subr.mxu0 0.0
        %1650 = vmatpush1.msra.mxu0 %v1611
        %1651 = vmatprep.subr.mxu0 0.0
        %1652 = vmatpush1.msra.mxu0 0.0
        %1653 = vmatprep.subr.mxu0 0.0
        %1654 = vmatpush1.msra.mxu0 0.0
        %1655 = vmatprep.subr.mxu0 0.0
        %1656 = vmatpush1.msra.mxu0 0.0
        %1657 = vmatprep.subr.mxu0 0.0
        %1658 = vmatpush1.msra.mxu0 0.0
        %1659 = vmatprep.subr.mxu0 0.0
        %1660 = vmatpush1.msra.mxu0 0.0
        %1661 = vmatprep.subr.mxu0 0.0
        %1662 = vmatpush1.msra.mxu0 0.0
        %1663 = vmatprep.subr.mxu0 0.0
        %1664 = vmatpush1.msra.mxu0 0.0
        %1665 = vmatprep.subr.mxu0 0.0
        %1666 = vmatpush1.msra.mxu0 0.0
        %1667 = vmatprep.subr.mxu0 0.0
        %1668 = vmatpush1.msra.mxu0 0.0
        %1669 = vmatprep.subr.mxu0 0.0
        %1670 = vmatpush1.msra.mxu0 0.0
        %1671 = vmatprep.subr.mxu0 0.0
        %1672 = vmatpush1.msra.mxu0 0.0
        %1673 = vmatprep.subr.mxu0 0.0
        %1674 = vmatpush1.msra.mxu0 0.0
        %1675 = vmatprep.subr.mxu0 0.0
        %1676 = vmatpush1.msra.mxu0 0.0
        %1677 = vmatprep.subr.mxu0 0.0
        %1678 = vmatpush1.msra.mxu0 0.0
        %1679 = vmatprep.subr.mxu0 0.0
        %1680 = vmatpush1.msra.mxu0 0.0
        %1681 = vmatprep.subr.mxu0 0.0
        %1682 = vmatpush1.msra.mxu0 0.0
        %1683 = vmatprep.mubr.f32.mxu0 0.0
        %1684 = vmatmul.mubr.f32.gmra.mrb[0].mxu0 %v1297
        %v1685 = vpop.f32.mrb[0].mxu0
        %v1686 = vadd.f32 %v1617, %v1685
        %v1687 = vpop.f32.mrb[0].mxu0
        %1688 = vmatprep.mubr.f32.mxu0 0.0
        %1689 = vmatmul.mubr.f32.gmra.mrb[0].mxu0 %v1302
        %v1690 = vpop.f32.mrb[0].mxu0
        %v1691 = vadd.f32 %v1617, %v1690
        %v1692 = vpop.f32.mrb[0].mxu0
        %1693 = vmatprep.mubr.f32.mxu0 0.0
        %1694 = vmatmul.mubr.f32.gmra.mrb[0].mxu0 %v1307
        %v1695 = vpop.f32.mrb[0].mxu0
        %v1696 = vadd.f32 %v1617, %v1695
        %v1697 = vpop.f32.mrb[0].mxu0
        %1698 = vmatprep.mubr.f32.mxu0 0.0
        %1699 = vmatmul.mubr.f32.gmra.mrb[0].mxu0 %v1312
        %v1700 = vpop.f32.mrb[0].mxu0
        %v1701 = vadd.f32 %v1617, %v1700
        %v1702 = vpop.f32.mrb[0].mxu0
        %1703 = vmatprep.mubr.f32.mxu0 0.0
        %1704 = vmatmul.mubr.f32.gmra.mrb[0].mxu0 %v1317
        %v1705 = vpop.f32.mrb[0].mxu0
        %v1706 = vadd.f32 %v1617, %v1705
        %v1707 = vpop.f32.mrb[0].mxu0
        %1708 = vmatprep.mubr.f32.mxu0 0.0
        %1709 = vmatmul.mubr.f32.gmra.mrb[0].mxu0 %v1322
        %v1710 = vpop.f32.mrb[0].mxu0
        %v1711 = vadd.f32 %v1617, %v1710
        %v1712 = vpop.f32.mrb[0].mxu0
        %1713 = vdwg.mxu0
        %v1714 = vtanh.pop %v1686
        %v1715 = vtanh.pop %v1691
        %v1716 = vtanh.pop %v1696
        %v1717 = vtanh.pop %v1701
        %v1718 = vtanh.pop %v1706
        %v1719 = vtanh.pop %v1711
        %v1721 = vsel %vm1494, %v1595, 0
        %1723 = vmatprep.subr.mxu0 0.0
        %1724 = vmatpush1.msra.mxu0 %v1714
        %1725 = vmatprep.subr.mxu0 0.0
        %1726 = vmatpush1.msra.mxu0 %v1715
        %1727 = vmatprep.subr.mxu0 0.0
        %1728 = vmatpush1.msra.mxu0 %v1716
        %1729 = vmatprep.subr.mxu0 0.0
        %1730 = vmatpush1.msra.mxu0 %v1717
        %1731 = vmatprep.subr.mxu0 0.0
        %1732 = vmatpush1.msra.mxu0 %v1718
        %1733 = vmatprep.subr.mxu0 0.0
        %1734 = vmatpush1.msra.mxu0 %v1719
        %1735 = vmatprep.subr.mxu0 0.0
        %1736 = vmatpush1.msra.mxu0 0.0
        %1737 = vmatprep.subr.mxu0 0.0
        %1738 = vmatpush1.msra.mxu0 0.0
        %1739 = vmatprep.subr.mxu0 0.0
        %1740 = vmatpush1.msra.mxu0 0.0
        %1741 = vmatprep.subr.mxu0 0.0
        %1742 = vmatpush1.msra.mxu0 0.0
        %1743 = vmatprep.subr.mxu0 0.0
        %1744 = vmatpush1.msra.mxu0 0.0
        %1745 = vmatprep.subr.mxu0 0.0
        %1746 = vmatpush1.msra.mxu0 0.0
        %1747 = vmatprep.subr.mxu0 0.0
        %1748 = vmatpush1.msra.mxu0 0.0
        %1749 = vmatprep.subr.mxu0 0.0
        %1750 = vmatpush1.msra.mxu0 0.0
        %1751 = vmatprep.subr.mxu0 0.0
        %1752 = vmatpush1.msra.mxu0 0.0
        %1753 = vmatprep.subr.mxu0 0.0
        %1754 = vmatpush1.msra.mxu0 0.0
        %1755 = vmatprep.subr.mxu0 0.0
        %1756 = vmatpush1.msra.mxu0 0.0
        %1757 = vmatprep.subr.mxu0 0.0
        %1758 = vmatpush1.msra.mxu0 0.0
        %1759 = vmatprep.subr.mxu0 0.0
        %1760 = vmatpush1.msra.mxu0 0.0
        %1761 = vmatprep.subr.mxu0 0.0
        %1762 = vmatpush1.msra.mxu0 0.0
        %1763 = vmatprep.subr.mxu0 0.0
        %1764 = vmatpush1.msra.mxu0 0.0
        %1765 = vmatprep.subr.mxu0 0.0
        %1766 = vmatpush1.msra.mxu0 0.0
        %1767 = vmatprep.subr.mxu0 0.0
        %1768 = vmatpush1.msra.mxu0 0.0
        %1769 = vmatprep.subr.mxu0 0.0
        %1770 = vmatpush1.msra.mxu0 0.0
        %1771 = vmatprep.subr.mxu0 0.0
        %1772 = vmatpush1.msra.mxu0 0.0
        %1773 = vmatprep.subr.mxu0 0.0
        %1774 = vmatpush1.msra.mxu0 0.0
        %1775 = vmatprep.subr.mxu0 0.0
        %1776 = vmatpush1.msra.mxu0 0.0
        %1777 = vmatprep.subr.mxu0 0.0
        %1778 = vmatpush1.msra.mxu0 0.0
        %1779 = vmatprep.subr.mxu0 0.0
        %1780 = vmatpush1.msra.mxu0 0.0
        %1781 = vmatprep.subr.mxu0 0.0
        %1782 = vmatpush1.msra.mxu0 0.0
        %1783 = vmatprep.subr.mxu0 0.0
        %1784 = vmatpush1.msra.mxu0 0.0
        %1785 = vmatprep.subr.mxu0 0.0
        %1786 = vmatpush1.msra.mxu0 0.0
        %1787 = vmatprep.mubr.f32.mxu0 0.0
        %1788 = vmatmul.mubr.f32.gmra.mrb[0].mxu0 %v1721
        %v1789 = vpop.f32.mrb[0].mxu0
        %v1790 = vadd.f32 0.0, %v1789
        %v1791 = vpop.f32.mrb[0].mxu0
        %1792 = vdwg.mxu0
        %1793 = vst [vmem:[%s451] sm:$0xff] %v1790
        %s1794 = sand.u32 %s298, 1
        %s1795 = scalar_lea.sflag [#allocation3], %s1794
        %s1796 = sand.u32 %s298, 1
        %s1797 = smul.addr %s1796, 8
        %s1798 = scalar_lea.vmem [#allocation2], %s1797
        %p1799 = scmp.lt.s32.totalorder %s28, 1
        %s1800 = scalar_select %p1799, %s28, 1
        %s1801 = smul.addr %s1800, 8
        %s1802 = scalar_lea.vmem %s13, %s1801
        // Predicated region
        $region69: #{rag_forward.1} parent=67 // pred_check
          %p1803 = pneg %p308
        $region70: #{rag_forward.1} parent=67 // pred_check_branch
          %1805 = sbr.rel (%p1803) target = $region72
        $region71: #{rag_forward.1} parent=67 // pred_region
          %s1807 = ssub.s32 128, 128
          %1808 = vsyncadd %s1795, %s1807
          %s1809 = smul.addr %s28, 128
          %s1810 = scalar_lea.hbm %s12, %s1809
          %s1812 = sshll.u32 %s1798, 4
          %s1813 = int_to_ptr.vmem [resolvable:$true] %s1812
          %1815 = dma.vmem_to_hbm [thread:$0]  %s1813, 128, %s1810, %s1795
        $region72: #{rag_forward.1} parent=67 // pred_fallthru
          _
        // Predicated region
        $region73: #{rag_forward.1} parent=67 // pred_check
          %p1816 = pneg %p334
        $region74: #{rag_forward.1} parent=67 // pred_check_branch
          %1818 = sbr.rel (%p1816) target = $region76
        $region75: #{rag_forward.1} parent=67 // pred_region
          _
        $region76: #{rag_forward.1} parent=67 // pred_fallthru
          _
      $region68: #{rag_forward.1} parent=5 // pred_fallthru
        _
      %p1819 = scmp.le.s32.totalorder 2, %s23
      // Predicated region
      $region77: #{rag_forward.1} parent=5 // pred_check
        %p1820 = pneg %p1819
      $region78: #{rag_forward.1} parent=5 // pred_check_branch
        %1822 = sbr.rel (%p1820) target = $region80
      $region79: #{rag_forward.1} parent=5 // pred_region
        %s1823 = ssub.s32 %s23, 2
        // Predicated region
        $region81: #{rag_forward.1} parent=79 // pred_check
          %p1824 = pneg %p314
        $region82: #{rag_forward.1} parent=79 // pred_check_branch
          %1826 = sbr.rel (%p1824) target = $region84
        $region83: #{rag_forward.1} parent=79 // pred_region
          %s1827 = sand.u32 %s299, 1
          %s1828 = scalar_lea.sflag [#allocation3], %s1827
          %s1829 = sand.u32 %s299, 1
          %s1830 = smul.addr %s1829, 8
          %s1831 = scalar_lea.vmem [#allocation2], %s1830
          %1832 = dma.done %s1828, 128
        $region84: #{rag_forward.1} parent=79 // pred_fallthru
          _
        // Predicated region
        $region85: #{rag_forward.1} parent=79 // pred_check
          %p1833 = pneg %p340
        $region86: #{rag_forward.1} parent=79 // pred_check_branch
          %1835 = sbr.rel (%p1833) target = $region88
        $region87: #{rag_forward.1} parent=79 // pred_region
          %p1836 = scmp.lt.s32.totalorder %s29, 1
          %s1837 = scalar_select %p1836, %s29, 1
          %s1838 = smul.addr %s1837, 8
          %s1839 = scalar_lea.vmem %s13, %s1838
        $region88: #{rag_forward.1} parent=79 // pred_fallthru
          _
      $region80: #{rag_forward.1} parent=5 // pred_fallthru
        _
    $region6: #{rag_forward.1} parent=1 // loop_footer
      %s27 = sadd.s32 1, %s23
    $region7: #{rag_forward.1} parent=1 // loop_footer_branch
      %22 = sbr.rel target = $region3
    $region8: #{rag_forward.1} parent=1 // loop_exit
      _
    %1840 = vsyncpa [#allocation3], 1
    %s1841 = scalar_lea.sflag [#allocation3], 1
    %1842 = vsyncpa %s1841, 1

</llo_original>
